<compile_context>
chip_gen: v5e
topology: v5e:2x2
jax: 0.10.0
libtpu: 0.0.40
codegen_flags: <defaults>
</compile_context>

<pallas_src>
import math

import jax
import jax.numpy as jnp
from jax import lax
from jax.experimental import pallas as pl
from jax.experimental.pallas import tpu as pltpu

# ----- synthetic "mini CLIP" config -------------------------------------------------
B, T, D = 2, 8, 32          # batch, context length, transformer width
H = 4                        # attention heads
HD = D // H                  # head dim
MLP = 4 * D                  # MLP hidden width
VOCAB = 64                   # vocab size (VOCAB-1 plays the role of the EOT token)
PROJ = 16                    # text projection dim
LAYERS = 2                   # transformer layers
EPS = 1e-5                   # torch LayerNorm default
NEG_INF = -1e30              # mask fill value
BT = B * T
LANE = 128                   # lane width for dense output stores
LOG2_T = T.bit_length() - 1
assert (1 << LOG2_T) == T, "in-kernel mask uses shift/and; T must be a power of 2"


def _layer_norm(v, g, b):
    mu = jnp.mean(v, axis=-1, keepdims=True)
    var = jnp.mean((v - mu) ** 2, axis=-1, keepdims=True)
    return (v - mu) * jax.lax.rsqrt(var + EPS) * g + b


# ----- fused Pallas kernel -----------------------------------------------------------
def clip_fused_kernel(x_ref, eot1h_ref,
                      wqkv_ref, bqkv_ref, wo_ref, bo_ref, g1_ref, b1_ref,
                      wf1_ref, bf1_ref, wf2_ref, bf2_ref, g2_ref, b2_ref,
                      lnf_g_ref, lnf_b_ref, projp_ref,
                      xout_ref, sent_ref):
    x = x_ref[...]                                                # (BT, D) f32

    # block-diagonal causal mask built in-kernel (iota + shift/and), hoisted out of the loop
    r = lax.broadcasted_iota(jnp.int32, (BT, BT), 0)              # query index
    c = lax.broadcasted_iota(jnp.int32, (BT, BT), 1)              # key index
    keep = ((r >> LOG2_T) == (c >> LOG2_T)) & ((c & (T - 1)) <= (r & (T - 1)))
    mask = jnp.where(keep, 0.0, NEG_INF).astype(jnp.float32)      # (BT, BT)

    for l in range(LAYERS):                                       # static unroll (LAYERS=2)
        # ---- pre-LN attention: one fused bf16 QKV matmul, heads split after ----
        xn = _layer_norm(x, g1_ref[l], b1_ref[l])                 # (BT, D) f32
        qkv = jnp.dot(xn.astype(jnp.bfloat16), wqkv_ref[l],
                      preferred_element_type=jnp.float32) + bqkv_ref[l]   # (BT, 3D)
        heads = []
        for h in range(H):                                        # static lane slices per head
            q = qkv[:, h * HD:(h + 1) * HD]                       # 1/sqrt(HD) already folded
            k = qkv[:, D + h * HD:D + (h + 1) * HD]
            v = qkv[:, 2 * D + h * HD:2 * D + (h + 1) * HD]
            s = lax.dot_general(q.astype(jnp.bfloat16), k.astype(jnp.bfloat16),
                                (((1,), (1,)), ((), ())),
                                preferred_element_type=jnp.float32) + mask   # (BT, BT)
            s = s - jnp.max(s, axis=-1, keepdims=True)
            p = jnp.exp(s)
            p = p / jnp.sum(p, axis=-1, keepdims=True)            # exact softmax (f32)
            heads.append(jnp.dot(p.astype(jnp.bfloat16), v.astype(jnp.bfloat16),
                                 preferred_element_type=jnp.float32))        # (BT, HD)
        a = jnp.concatenate(heads, axis=-1)                       # (BT, D) head-major
        # single fused output projection (K=D), replaces per-head proj + head-sum
        x = x + jnp.dot(a.astype(jnp.bfloat16), wo_ref[l],
                        preferred_element_type=jnp.float32) + bo_ref[l]

        # ---- pre-LN MLP with QuickGELU ----
        xn2 = _layer_norm(x, g2_ref[l], b2_ref[l])
        hdn = jnp.dot(xn2.astype(jnp.bfloat16), wf1_ref[l],
                      preferred_element_type=jnp.float32) + bf1_ref[l]
        hdn = hdn * jax.nn.sigmoid(1.702 * hdn)
        x = x + jnp.dot(hdn.astype(jnp.bfloat16), wf2_ref[l],
                        preferred_element_type=jnp.float32) + bf2_ref[l]

    # ---- final LayerNorm (kept live in vregs for pooling) ----
    xln = _layer_norm(x, lnf_g_ref[...], lnf_b_ref[...])          # (BT, D) f32

    # lane-dense (BT, 128) writeback; wrapper slices back to (B, T, D)
    xout_ref[...] = jnp.concatenate(
        [xln, jnp.zeros((BT, LANE - D), jnp.float32)], axis=-1)

    # EOT pooling from the LIVE f32 value (one-hot MXU select), then padded projection
    pooled = jnp.dot(eot1h_ref[...], xln, preferred_element_type=jnp.float32)   # (B, D)
    sent_ref[...] = jnp.dot(pooled, projp_ref[...],
                            preferred_element_type=jnp.float32)                  # (B, 128)


# ----- one-time (model-load) parameter re-layout --------------------------------------
def prep_kernel_params(params):
    """Stack per-layer weights, fold 1/sqrt(HD) into the fused W_qkv/b_qkv query
    slice, cast matmul weights to bf16 (resident footprint /2), pad the text
    projection to a lane-dense (D, 128) slab.  Runs ONCE, not per forward."""
    tok_emb, pos_emb, layers, ln_f_g, ln_f_b, proj = params
    scale = 1.0 / math.sqrt(HD)
    col_scale = jnp.concatenate(
        [jnp.full((1, D), scale, jnp.float32), jnp.ones((1, 2 * D), jnp.float32)], axis=-1)

    stacked = [[] for _ in range(12)]
    for (wqkv, bqkv, wo, bo, g1, b1, wf1, bf1, wf2, bf2, g2, b2) in layers:
        vals = ((wqkv * col_scale).astype(jnp.bfloat16),   # (D, 3D) bf16, scale folded
                (bqkv * col_scale).astype(jnp.float32),    # (1, 3D) f32
                wo.astype(jnp.bfloat16), bo.astype(jnp.float32),
                g1.astype(jnp.float32), b1.astype(jnp.float32),
                wf1.astype(jnp.bfloat16), bf1.astype(jnp.float32),
                wf2.astype(jnp.bfloat16), bf2.astype(jnp.float32),
                g2.astype(jnp.float32), b2.astype(jnp.float32))
        for col, v in zip(stacked, vals):
            col.append(v)
    stacked = tuple(jnp.stack(c, axis=0) for c in stacked)

    proj_pad = jnp.zeros((D, LANE), jnp.float32).at[:, :PROJ].set(proj)
    kernel_weights = (*stacked,
                      ln_f_g.astype(jnp.float32), ln_f_b.astype(jnp.float32), proj_pad)
    return tok_emb, pos_emb, kernel_weights


# ----- pallas_call wrapper ------------------------------------------------------------
def _full_spec(arr):
    nd = arr.ndim
    return pl.BlockSpec(arr.shape, lambda i, _nd=nd: (0,) * _nd)


@jax.jit
def clip_forward(text, tok_emb, pos_emb, kernel_weights):
    # glue: token-embedding gather + positional embedding + EOT one-hot
    x = jnp.take(tok_emb, text, axis=0) + pos_emb[None, :, :]      # (B, T, D)
    x_flat = x.reshape(BT, D).astype(jnp.float32)
    eot_idx = jnp.argmax(text, axis=-1).astype(jnp.int32)          # EOT has highest token id
    targets = jnp.arange(B, dtype=jnp.int32) * T + eot_idx         # row index into (BT, D)
    eot_onehot = (jnp.arange(BT, dtype=jnp.int32)[None, :] == targets[:, None]).astype(jnp.float32)

    inputs = (x_flat, eot_onehot, *kernel_weights)
    xout_pad, sent_pad = pl.pallas_call(
        clip_fused_kernel,
        out_shape=(jax.ShapeDtypeStruct((BT, LANE), jnp.float32),
                   jax.ShapeDtypeStruct((B, LANE), jnp.float32)),
        grid=(1,),
        in_specs=[_full_spec(a) for a in inputs],
        out_specs=(pl.BlockSpec((BT, LANE), lambda i: (0, 0)),
                   pl.BlockSpec((B, LANE), lambda i: (0, 0))),
        # Toy config: everything (<1 MB) fits default scoped VMEM.  At real CLIP
        # sizes: raise vmem_limit_bytes (v5e/v6e residency) or stream layers over a
        # "parallel" grid axis (v7x, 64 MiB VMEM / 2 TensorCores).
        compiler_params=pltpu.CompilerParams(dimension_semantics=("arbitrary",)),
    )(*inputs)

    x_ln = xout_pad[:, :D].reshape(B, T, D)
    sent = sent_pad[:, :PROJ]
    word_mask = text > 0
    return sent.astype(jnp.float32), x_ln.astype(jnp.float32), word_mask


# ----- parameter init (deterministic, synthetic, canonical layout) --------------------
def init_params(key):
    keys = iter(jax.random.split(key, 6 + 12 * LAYERS))
    nrm = lambda shape, s=0.02: (s * jax.random.normal(next(keys), shape)).astype(jnp.float32)

    tok_emb = nrm((VOCAB, D))
    pos_emb = nrm((T, D))
    layers = []
    for _ in range(LAYERS):
        layers.append((
            nrm((D, 3 * D)),              # W_qkv  (in_proj_weight.T)
            nrm((1, 3 * D)),              # b_qkv
            nrm((D, D)),                  # W_out  (out_proj.weight.T)
            nrm((1, D)),                  # b_out
            1.0 + nrm((1, D)),            # ln1 gamma
            nrm((1, D)),                  # ln1 beta
            nrm((D, MLP)),                # W_fc1  (c_fc.weight.T)
            nrm((1, MLP)),                # b_fc1
            nrm((MLP, D)),                # W_fc2  (c_proj.weight.T)
            nrm((1, D)),                  # b_fc2
            1.0 + nrm((1, D)),            # ln2 gamma
            nrm((1, D)),                  # ln2 beta
        ))
    ln_f_g = 1.0 + nrm((1, D))
    ln_f_b = nrm((1, D))
    text_projection = nrm((D, PROJ))
    return tok_emb, pos_emb, layers, ln_f_g, ln_f_b, text_projection


# ----- pure-JAX reference for verification --------------------------------------------
def clip_forward_ref(text, params):
    tok_emb, pos_emb, layers, ln_f_g, ln_f_b, proj = params
    # emulate the kernel's bf16-resident matmul weights (biases / LN / proj stay f32)
    q16 = lambda w: w.astype(jnp.bfloat16).astype(jnp.float32)

    x = jnp.take(tok_emb, text, axis=0) + pos_emb[None, :, :]
    row = jnp.arange(T)[:, None]
    col = jnp.arange(T)[None, :]
    mask = jnp.where(col <= row, 0.0, NEG_INF).astype(jnp.float32)
    scale = 1.0 / math.sqrt(HD)
    for (wqkv, bqkv, wo, bo, g1, b1, wf1, bf1, wf2, bf2, g2, b2) in layers:
        xn = _layer_norm(x, g1[0], b1[0])
        qkv = xn @ q16(wqkv) + bqkv[0]
        q, k, v = qkv[..., :D], qkv[..., D:2 * D], qkv[..., 2 * D:]
        q = q.reshape(B, T, H, HD); k = k.reshape(B, T, H, HD); v = v.reshape(B, T, H, HD)
        s = jnp.einsum('bqhd,bkhd->bhqk', q, k) * scale + mask
        p = jax.nn.softmax(s, axis=-1)
        a = jnp.einsum('bhqk,bkhd->bqhd', p, v).reshape(B, T, D)
        x = x + (a @ q16(wo) + bo[0])
        xn2 = _layer_norm(x, g2[0], b2[0])
        hdn = xn2 @ q16(wf1) + bf1[0]
        hdn = hdn * jax.nn.sigmoid(1.702 * hdn)
        x = x + (hdn @ q16(wf2) + bf2[0])
    x_ln = _layer_norm(x, ln_f_g[0], ln_f_b[0])
    eot = jnp.argmax(text, axis=-1)
    sent = x_ln[jnp.arange(B), eot] @ proj
    return sent, x_ln, text > 0


if __name__ == "__main__":
    key = jax.random.PRNGKey(0)
    k_text, k_params = jax.random.split(key)

    # synthetic "tokenized" text: ids in [1, VOCAB-2], EOT (=VOCAB-1) then 0-padding
    lengths = jnp.array([5, 7], dtype=jnp.int32)
    tok = jax.random.randint(k_text, (B, T), 1, VOCAB - 1, dtype=jnp.int32)
    pos = jnp.arange(T, dtype=jnp.int32)[None, :]
    text = jnp.where(pos < lengths[:, None] - 1, tok, 0)
    text = jnp.where(pos == lengths[:, None] - 1, VOCAB - 1, text)

    params = init_params(k_params)
    tok_emb, pos_emb, kernel_weights = prep_kernel_params(params)   # one-time, model-load

    sent_x, x_out, word_mask = clip_forward(text, tok_emb, pos_emb, kernel_weights)
    jax.block_until_ready((sent_x, x_out, word_mask))

    sent_ref, x_ln_ref, word_mask_ref = clip_forward_ref(text, params)
    assert sent_x.shape == (B, PROJ) and x_out.shape == (B, T, D) and word_mask.shape == (B, T)
    # tolerance covers bf16 MXU operands (activation casts) in the kernel vs f32 reference
    assert jnp.allclose(sent_x, sent_ref, atol=2e-2, rtol=2e-2)
    assert jnp.allclose(x_out, x_ln_ref, atol=2e-2, rtol=2e-2)
    assert jnp.array_equal(word_mask, word_mask_ref)

    print("KERNEL_OK")
</pallas_src>

<mosaic_0001>
module attributes {stable_mosaic.version = 11 : i64} {
  func.func @clip_fused_kernel(%arg0: i32, %arg1: memref<16x32xf32, #tpu.memory_space<vmem>>, %arg2: memref<2x16xf32, #tpu.memory_space<vmem>>, %arg3: memref<2x32x96xbf16, #tpu.memory_space<vmem>>, %arg4: memref<2x1x96xf32, #tpu.memory_space<vmem>>, %arg5: memref<2x32x32xbf16, #tpu.memory_space<vmem>>, %arg6: memref<2x1x32xf32, #tpu.memory_space<vmem>>, %arg7: memref<2x1x32xf32, #tpu.memory_space<vmem>>, %arg8: memref<2x1x32xf32, #tpu.memory_space<vmem>>, %arg9: memref<2x32x128xbf16, #tpu.memory_space<vmem>>, %arg10: memref<2x1x128xf32, #tpu.memory_space<vmem>>, %arg11: memref<2x128x32xbf16, #tpu.memory_space<vmem>>, %arg12: memref<2x1x32xf32, #tpu.memory_space<vmem>>, %arg13: memref<2x1x32xf32, #tpu.memory_space<vmem>>, %arg14: memref<2x1x32xf32, #tpu.memory_space<vmem>>, %arg15: memref<1x32xf32, #tpu.memory_space<vmem>>, %arg16: memref<1x32xf32, #tpu.memory_space<vmem>>, %arg17: memref<32x128xf32, #tpu.memory_space<vmem>>, %arg18: memref<16x128xf32, #tpu.memory_space<vmem>>, %arg19: memref<2x128xf32, #tpu.memory_space<vmem>>) attributes {dimension_semantics = [#tpu.dimension_semantics<arbitrary>], iteration_bounds = array<i64: 1>, scalar_prefetch = 0 : i64, scratch_operands = 0 : i64, tpu.core_type = #tpu.core_type<tc>, window_params = [{pipeline_mode = #tpu.pipeline_mode<synchronous>, transform_indices = @transform_0, window_bounds = array<i64: 16, 32>}, {pipeline_mode = #tpu.pipeline_mode<synchronous>, transform_indices = @transform_1, window_bounds = array<i64: 2, 16>}, {pipeline_mode = #tpu.pipeline_mode<synchronous>, transform_indices = @transform_2, window_bounds = array<i64: 2, 32, 96>}, {pipeline_mode = #tpu.pipeline_mode<synchronous>, transform_indices = @transform_3, window_bounds = array<i64: 2, 1, 96>}, {pipeline_mode = #tpu.pipeline_mode<synchronous>, transform_indices = @transform_4, window_bounds = array<i64: 2, 32, 32>}, {pipeline_mode = #tpu.pipeline_mode<synchronous>, transform_indices = @transform_5, window_bounds = array<i64: 2, 1, 32>}, {pipeline_mode = #tpu.pipeline_mode<synchronous>, transform_indices = @transform_6, window_bounds = array<i64: 2, 1, 32>}, {pipeline_mode = #tpu.pipeline_mode<synchronous>, transform_indices = @transform_7, window_bounds = array<i64: 2, 1, 32>}, {pipeline_mode = #tpu.pipeline_mode<synchronous>, transform_indices = @transform_8, window_bounds = array<i64: 2, 32, 128>}, {pipeline_mode = #tpu.pipeline_mode<synchronous>, transform_indices = @transform_9, window_bounds = array<i64: 2, 1, 128>}, {pipeline_mode = #tpu.pipeline_mode<synchronous>, transform_indices = @transform_10, window_bounds = array<i64: 2, 128, 32>}, {pipeline_mode = #tpu.pipeline_mode<synchronous>, transform_indices = @transform_11, window_bounds = array<i64: 2, 1, 32>}, {pipeline_mode = #tpu.pipeline_mode<synchronous>, transform_indices = @transform_12, window_bounds = array<i64: 2, 1, 32>}, {pipeline_mode = #tpu.pipeline_mode<synchronous>, transform_indices = @transform_13, window_bounds = array<i64: 2, 1, 32>}, {pipeline_mode = #tpu.pipeline_mode<synchronous>, transform_indices = @transform_14, window_bounds = array<i64: 1, 32>}, {pipeline_mode = #tpu.pipeline_mode<synchronous>, transform_indices = @transform_15, window_bounds = array<i64: 1, 32>}, {pipeline_mode = #tpu.pipeline_mode<synchronous>, transform_indices = @transform_16, window_bounds = array<i64: 32, 128>}, {pipeline_mode = #tpu.pipeline_mode<synchronous>, transform_indices = @transform_17, window_bounds = array<i64: 16, 128>}, {pipeline_mode = #tpu.pipeline_mode<synchronous>, transform_indices = @transform_18, window_bounds = array<i64: 2, 128>}]} {
    %c0 = arith.constant 0 : index
    %c0_0 = arith.constant 0 : index
    %0 = vector.load %arg1[%c0, %c0_0] : memref<16x32xf32, #tpu.memory_space<vmem>>, vector<16x32xf32>
    %1 = tpu.iota {dimensions = array<i32: 0>} : vector<16x16xi32>
    %2 = tpu.iota {dimensions = array<i32: 1>} : vector<16x16xi32>
    %c3_i32 = arith.constant 3 : i32
    %3 = vector.broadcast %c3_i32 : i32 to vector<16x16xi32>
    %4 = arith.shrsi %1, %3 : vector<16x16xi32>
    %c3_i32_1 = arith.constant 3 : i32
    %5 = vector.broadcast %c3_i32_1 : i32 to vector<16x16xi32>
    %6 = arith.shrsi %2, %5 : vector<16x16xi32>
    %7 = arith.cmpi eq, %4, %6 : vector<16x16xi32>
    %c7_i32 = arith.constant 7 : i32
    %8 = vector.broadcast %c7_i32 : i32 to vector<16x16xi32>
    %9 = arith.andi %2, %8 : vector<16x16xi32>
    %c7_i32_2 = arith.constant 7 : i32
    %10 = vector.broadcast %c7_i32_2 : i32 to vector<16x16xi32>
    %11 = arith.andi %1, %10 : vector<16x16xi32>
    %12 = arith.cmpi sle, %9, %11 : vector<16x16xi32>
    %13 = arith.andi %7, %12 : vector<16x16xi1>
    %cst = arith.constant 0.000000e+00 : f32
    %cst_3 = arith.constant -1.000000e+30 : f32
    %14 = vector.broadcast %cst : f32 to vector<16x16xf32>
    %15 = vector.broadcast %cst_3 : f32 to vector<16x16xf32>
    %16 = arith.select %13, %14, %15 : vector<16x16xi1>, vector<16x16xf32>
    %c0_4 = arith.constant 0 : index
    %c0_5 = arith.constant 0 : index
    %c0_6 = arith.constant 0 : index
    %17 = vector.load %arg7[%c0_4, %c0_5, %c0_6] : memref<2x1x32xf32, #tpu.memory_space<vmem>>, vector<1x1x32xf32>
    %18 = vector.shape_cast %17 : vector<1x1x32xf32> to vector<1x32xf32>
    %c0_7 = arith.constant 0 : index
    %c0_8 = arith.constant 0 : index
    %c0_9 = arith.constant 0 : index
    %19 = vector.load %arg8[%c0_7, %c0_8, %c0_9] : memref<2x1x32xf32, #tpu.memory_space<vmem>>, vector<1x1x32xf32>
    %20 = vector.shape_cast %19 : vector<1x1x32xf32> to vector<1x32xf32>
    %cst_10 = arith.constant dense<0.000000e+00> : vector<16xf32>
    %21 = vector.multi_reduction <add>, %0, %cst_10 [1] : vector<16x32xf32> to vector<16xf32>
    %22 = vector.shape_cast %21 : vector<16xf32> to vector<16x1xf32>
    %cst_11 = arith.constant 3.200000e+01 : f32
    %23 = vector.broadcast %cst_11 : f32 to vector<16x1xf32>
    %24 = arith.divf %22, %23 : vector<16x1xf32>
    %25 = vector.broadcast %24 : vector<16x1xf32> to vector<16x32xf32>
    %26 = arith.subf %0, %25 : vector<16x32xf32>
    %27 = arith.mulf %26, %26 : vector<16x32xf32>
    %cst_12 = arith.constant dense<0.000000e+00> : vector<16xf32>
    %28 = vector.multi_reduction <add>, %27, %cst_12 [1] : vector<16x32xf32> to vector<16xf32>
    %29 = vector.shape_cast %28 : vector<16xf32> to vector<16x1xf32>
    %cst_13 = arith.constant 3.200000e+01 : f32
    %30 = vector.broadcast %cst_13 : f32 to vector<16x1xf32>
    %31 = arith.divf %29, %30 : vector<16x1xf32>
    %32 = vector.broadcast %24 : vector<16x1xf32> to vector<16x32xf32>
    %33 = arith.subf %0, %32 : vector<16x32xf32>
    %cst_14 = arith.constant 9.99999974E-6 : f32
    %34 = vector.broadcast %cst_14 : f32 to vector<16x1xf32>
    %35 = arith.addf %31, %34 : vector<16x1xf32>
    %36 = math.rsqrt %35 : vector<16x1xf32>
    %37 = vector.broadcast %36 : vector<16x1xf32> to vector<16x32xf32>
    %38 = arith.mulf %33, %37 : vector<16x32xf32>
    %39 = vector.broadcast %18 : vector<1x32xf32> to vector<16x32xf32>
    %40 = arith.mulf %38, %39 : vector<16x32xf32>
    %41 = vector.broadcast %20 : vector<1x32xf32> to vector<16x32xf32>
    %42 = arith.addf %40, %41 : vector<16x32xf32>
    %43 = arith.truncf %42 : vector<16x32xf32> to vector<16x32xbf16>
    %c0_15 = arith.constant 0 : index
    %c0_16 = arith.constant 0 : index
    %c0_17 = arith.constant 0 : index
    %44 = vector.load %arg3[%c0_15, %c0_16, %c0_17] : memref<2x32x96xbf16, #tpu.memory_space<vmem>>, vector<1x32x96xbf16>
    %45 = vector.shape_cast %44 : vector<1x32x96xbf16> to vector<32x96xbf16>
    %cst_18 = arith.constant dense<0.000000e+00> : vector<16x96xf32>
    %46 = tpu.matmul %43, %45, %cst_18 {dimension_numbers = #tpu.dot_dimension_numbers<[1], [0], [0], [1], [0, 0, 1, 1], [], []>} : vector<16x32xbf16>, vector<32x96xbf16>, vector<16x96xf32> -> vector<16x96xf32>
    %c0_19 = arith.constant 0 : index
    %c0_20 = arith.constant 0 : index
    %c0_21 = arith.constant 0 : index
    %47 = vector.load %arg4[%c0_19, %c0_20, %c0_21] : memref<2x1x96xf32, #tpu.memory_space<vmem>>, vector<1x1x96xf32>
    %48 = vector.shape_cast %47 : vector<1x1x96xf32> to vector<1x96xf32>
    %49 = vector.broadcast %48 : vector<1x96xf32> to vector<16x96xf32>
    %50 = arith.addf %46, %49 : vector<16x96xf32>
    %51 = vector.extract_strided_slice %50 {offsets = [0, 0], sizes = [16, 8], strides = [1, 1]} : vector<16x96xf32> to vector<16x8xf32>
    %52 = vector.extract_strided_slice %50 {offsets = [0, 32], sizes = [16, 8], strides = [1, 1]} : vector<16x96xf32> to vector<16x8xf32>
    %53 = vector.extract_strided_slice %50 {offsets = [0, 64], sizes = [16, 8], strides = [1, 1]} : vector<16x96xf32> to vector<16x8xf32>
    %54 = arith.truncf %51 : vector<16x8xf32> to vector<16x8xbf16>
    %55 = arith.truncf %52 : vector<16x8xf32> to vector<16x8xbf16>
    %cst_22 = arith.constant dense<0.000000e+00> : vector<16x16xf32>
    %56 = tpu.matmul %54, %55, %cst_22 {dimension_numbers = #tpu.dot_dimension_numbers<[1], [1], [0], [0], [0, 0, 1, 0], [], []>} : vector<16x8xbf16>, vector<16x8xbf16>, vector<16x16xf32> -> vector<16x16xf32>
    %57 = arith.addf %56, %16 : vector<16x16xf32>
    %cst_23 = arith.constant dense<0xFF800000> : vector<16xf32>
    %58 = vector.multi_reduction <maximumf>, %57, %cst_23 [1] : vector<16x16xf32> to vector<16xf32>
    %59 = vector.shape_cast %58 : vector<16xf32> to vector<16x1xf32>
    %60 = vector.broadcast %59 : vector<16x1xf32> to vector<16x16xf32>
    %61 = arith.subf %57, %60 : vector<16x16xf32>
    %62 = math.exp %61 : vector<16x16xf32>
    %cst_24 = arith.constant dense<0.000000e+00> : vector<16xf32>
    %63 = vector.multi_reduction <add>, %62, %cst_24 [1] : vector<16x16xf32> to vector<16xf32>
    %64 = vector.shape_cast %63 : vector<16xf32> to vector<16x1xf32>
    %65 = vector.broadcast %64 : vector<16x1xf32> to vector<16x16xf32>
    %66 = arith.divf %62, %65 : vector<16x16xf32>
    %67 = arith.truncf %66 : vector<16x16xf32> to vector<16x16xbf16>
    %68 = arith.truncf %53 : vector<16x8xf32> to vector<16x8xbf16>
    %cst_25 = arith.constant dense<0.000000e+00> : vector<16x8xf32>
    %69 = tpu.matmul %67, %68, %cst_25 {dimension_numbers = #tpu.dot_dimension_numbers<[1], [0], [0], [1], [0, 0, 1, 1], [], []>} : vector<16x16xbf16>, vector<16x8xbf16>, vector<16x8xf32> -> vector<16x8xf32>
    %70 = vector.extract_strided_slice %50 {offsets = [0, 8], sizes = [16, 8], strides = [1, 1]} : vector<16x96xf32> to vector<16x8xf32>
    %71 = vector.extract_strided_slice %50 {offsets = [0, 40], sizes = [16, 8], strides = [1, 1]} : vector<16x96xf32> to vector<16x8xf32>
    %72 = vector.extract_strided_slice %50 {offsets = [0, 72], sizes = [16, 8], strides = [1, 1]} : vector<16x96xf32> to vector<16x8xf32>
    %73 = arith.truncf %70 : vector<16x8xf32> to vector<16x8xbf16>
    %74 = arith.truncf %71 : vector<16x8xf32> to vector<16x8xbf16>
    %cst_26 = arith.constant dense<0.000000e+00> : vector<16x16xf32>
    %75 = tpu.matmul %73, %74, %cst_26 {dimension_numbers = #tpu.dot_dimension_numbers<[1], [1], [0], [0], [0, 0, 1, 0], [], []>} : vector<16x8xbf16>, vector<16x8xbf16>, vector<16x16xf32> -> vector<16x16xf32>
    %76 = arith.addf %75, %16 : vector<16x16xf32>
    %cst_27 = arith.constant dense<0xFF800000> : vector<16xf32>
    %77 = vector.multi_reduction <maximumf>, %76, %cst_27 [1] : vector<16x16xf32> to vector<16xf32>
    %78 = vector.shape_cast %77 : vector<16xf32> to vector<16x1xf32>
    %79 = vector.broadcast %78 : vector<16x1xf32> to vector<16x16xf32>
    %80 = arith.subf %76, %79 : vector<16x16xf32>
    %81 = math.exp %80 : vector<16x16xf32>
    %cst_28 = arith.constant dense<0.000000e+00> : vector<16xf32>
    %82 = vector.multi_reduction <add>, %81, %cst_28 [1] : vector<16x16xf32> to vector<16xf32>
    %83 = vector.shape_cast %82 : vector<16xf32> to vector<16x1xf32>
    %84 = vector.broadcast %83 : vector<16x1xf32> to vector<16x16xf32>
    %85 = arith.divf %81, %84 : vector<16x16xf32>
    %86 = arith.truncf %85 : vector<16x16xf32> to vector<16x16xbf16>
    %87 = arith.truncf %72 : vector<16x8xf32> to vector<16x8xbf16>
    %cst_29 = arith.constant dense<0.000000e+00> : vector<16x8xf32>
    %88 = tpu.matmul %86, %87, %cst_29 {dimension_numbers = #tpu.dot_dimension_numbers<[1], [0], [0], [1], [0, 0, 1, 1], [], []>} : vector<16x16xbf16>, vector<16x8xbf16>, vector<16x8xf32> -> vector<16x8xf32>
    %89 = vector.extract_strided_slice %50 {offsets = [0, 16], sizes = [16, 8], strides = [1, 1]} : vector<16x96xf32> to vector<16x8xf32>
    %90 = vector.extract_strided_slice %50 {offsets = [0, 48], sizes = [16, 8], strides = [1, 1]} : vector<16x96xf32> to vector<16x8xf32>
    %91 = vector.extract_strided_slice %50 {offsets = [0, 80], sizes = [16, 8], strides = [1, 1]} : vector<16x96xf32> to vector<16x8xf32>
    %92 = arith.truncf %89 : vector<16x8xf32> to vector<16x8xbf16>
    %93 = arith.truncf %90 : vector<16x8xf32> to vector<16x8xbf16>
    %cst_30 = arith.constant dense<0.000000e+00> : vector<16x16xf32>
    %94 = tpu.matmul %92, %93, %cst_30 {dimension_numbers = #tpu.dot_dimension_numbers<[1], [1], [0], [0], [0, 0, 1, 0], [], []>} : vector<16x8xbf16>, vector<16x8xbf16>, vector<16x16xf32> -> vector<16x16xf32>
    %95 = arith.addf %94, %16 : vector<16x16xf32>
    %cst_31 = arith.constant dense<0xFF800000> : vector<16xf32>
    %96 = vector.multi_reduction <maximumf>, %95, %cst_31 [1] : vector<16x16xf32> to vector<16xf32>
    %97 = vector.shape_cast %96 : vector<16xf32> to vector<16x1xf32>
    %98 = vector.broadcast %97 : vector<16x1xf32> to vector<16x16xf32>
    %99 = arith.subf %95, %98 : vector<16x16xf32>
    %100 = math.exp %99 : vector<16x16xf32>
    %cst_32 = arith.constant dense<0.000000e+00> : vector<16xf32>
    %101 = vector.multi_reduction <add>, %100, %cst_32 [1] : vector<16x16xf32> to vector<16xf32>
    %102 = vector.shape_cast %101 : vector<16xf32> to vector<16x1xf32>
    %103 = vector.broadcast %102 : vector<16x1xf32> to vector<16x16xf32>
    %104 = arith.divf %100, %103 : vector<16x16xf32>
    %105 = arith.truncf %104 : vector<16x16xf32> to vector<16x16xbf16>
    %106 = arith.truncf %91 : vector<16x8xf32> to vector<16x8xbf16>
    %cst_33 = arith.constant dense<0.000000e+00> : vector<16x8xf32>
    %107 = tpu.matmul %105, %106, %cst_33 {dimension_numbers = #tpu.dot_dimension_numbers<[1], [0], [0], [1], [0, 0, 1, 1], [], []>} : vector<16x16xbf16>, vector<16x8xbf16>, vector<16x8xf32> -> vector<16x8xf32>
    %108 = vector.extract_strided_slice %50 {offsets = [0, 24], sizes = [16, 8], strides = [1, 1]} : vector<16x96xf32> to vector<16x8xf32>
    %109 = vector.extract_strided_slice %50 {offsets = [0, 56], sizes = [16, 8], strides = [1, 1]} : vector<16x96xf32> to vector<16x8xf32>
    %110 = vector.extract_strided_slice %50 {offsets = [0, 88], sizes = [16, 8], strides = [1, 1]} : vector<16x96xf32> to vector<16x8xf32>
    %111 = arith.truncf %108 : vector<16x8xf32> to vector<16x8xbf16>
    %112 = arith.truncf %109 : vector<16x8xf32> to vector<16x8xbf16>
    %cst_34 = arith.constant dense<0.000000e+00> : vector<16x16xf32>
    %113 = tpu.matmul %111, %112, %cst_34 {dimension_numbers = #tpu.dot_dimension_numbers<[1], [1], [0], [0], [0, 0, 1, 0], [], []>} : vector<16x8xbf16>, vector<16x8xbf16>, vector<16x16xf32> -> vector<16x16xf32>
    %114 = arith.addf %113, %16 : vector<16x16xf32>
    %cst_35 = arith.constant dense<0xFF800000> : vector<16xf32>
    %115 = vector.multi_reduction <maximumf>, %114, %cst_35 [1] : vector<16x16xf32> to vector<16xf32>
    %116 = vector.shape_cast %115 : vector<16xf32> to vector<16x1xf32>
    %117 = vector.broadcast %116 : vector<16x1xf32> to vector<16x16xf32>
    %118 = arith.subf %114, %117 : vector<16x16xf32>
    %119 = math.exp %118 : vector<16x16xf32>
    %cst_36 = arith.constant dense<0.000000e+00> : vector<16xf32>
    %120 = vector.multi_reduction <add>, %119, %cst_36 [1] : vector<16x16xf32> to vector<16xf32>
    %121 = vector.shape_cast %120 : vector<16xf32> to vector<16x1xf32>
    %122 = vector.broadcast %121 : vector<16x1xf32> to vector<16x16xf32>
    %123 = arith.divf %119, %122 : vector<16x16xf32>
    %124 = arith.truncf %123 : vector<16x16xf32> to vector<16x16xbf16>
    %125 = arith.truncf %110 : vector<16x8xf32> to vector<16x8xbf16>
    %cst_37 = arith.constant dense<0.000000e+00> : vector<16x8xf32>
    %126 = tpu.matmul %124, %125, %cst_37 {dimension_numbers = #tpu.dot_dimension_numbers<[1], [0], [0], [1], [0, 0, 1, 1], [], []>} : vector<16x16xbf16>, vector<16x8xbf16>, vector<16x8xf32> -> vector<16x8xf32>
    %127 = tpu.concatenate %69, %88, %107, %126 in 1 : vector<16x8xf32>, vector<16x8xf32>, vector<16x8xf32>, vector<16x8xf32> -> vector<16x32xf32>
    %128 = arith.truncf %127 : vector<16x32xf32> to vector<16x32xbf16>
    %c0_38 = arith.constant 0 : index
    %c0_39 = arith.constant 0 : index
    %c0_40 = arith.constant 0 : index
    %129 = vector.load %arg5[%c0_38, %c0_39, %c0_40] : memref<2x32x32xbf16, #tpu.memory_space<vmem>>, vector<1x32x32xbf16>
    %130 = vector.shape_cast %129 : vector<1x32x32xbf16> to vector<32x32xbf16>
    %cst_41 = arith.constant dense<0.000000e+00> : vector<16x32xf32>
    %131 = tpu.matmul %128, %130, %cst_41 {dimension_numbers = #tpu.dot_dimension_numbers<[1], [0], [0], [1], [0, 0, 1, 1], [], []>} : vector<16x32xbf16>, vector<32x32xbf16>, vector<16x32xf32> -> vector<16x32xf32>
    %132 = arith.addf %0, %131 : vector<16x32xf32>
    %c0_42 = arith.constant 0 : index
    %c0_43 = arith.constant 0 : index
    %c0_44 = arith.constant 0 : index
    %133 = vector.load %arg6[%c0_42, %c0_43, %c0_44] : memref<2x1x32xf32, #tpu.memory_space<vmem>>, vector<1x1x32xf32>
    %134 = vector.shape_cast %133 : vector<1x1x32xf32> to vector<1x32xf32>
    %135 = vector.broadcast %134 : vector<1x32xf32> to vector<16x32xf32>
    %136 = arith.addf %132, %135 : vector<16x32xf32>
    %c0_45 = arith.constant 0 : index
    %c0_46 = arith.constant 0 : index
    %c0_47 = arith.constant 0 : index
    %137 = vector.load %arg13[%c0_45, %c0_46, %c0_47] : memref<2x1x32xf32, #tpu.memory_space<vmem>>, vector<1x1x32xf32>
    %138 = vector.shape_cast %137 : vector<1x1x32xf32> to vector<1x32xf32>
    %c0_48 = arith.constant 0 : index
    %c0_49 = arith.constant 0 : index
    %c0_50 = arith.constant 0 : index
    %139 = vector.load %arg14[%c0_48, %c0_49, %c0_50] : memref<2x1x32xf32, #tpu.memory_space<vmem>>, vector<1x1x32xf32>
    %140 = vector.shape_cast %139 : vector<1x1x32xf32> to vector<1x32xf32>
    %cst_51 = arith.constant dense<0.000000e+00> : vector<16xf32>
    %141 = vector.multi_reduction <add>, %136, %cst_51 [1] : vector<16x32xf32> to vector<16xf32>
    %142 = vector.shape_cast %141 : vector<16xf32> to vector<16x1xf32>
    %cst_52 = arith.constant 3.200000e+01 : f32
    %143 = vector.broadcast %cst_52 : f32 to vector<16x1xf32>
    %144 = arith.divf %142, %143 : vector<16x1xf32>
    %145 = vector.broadcast %144 : vector<16x1xf32> to vector<16x32xf32>
    %146 = arith.subf %136, %145 : vector<16x32xf32>
    %147 = arith.mulf %146, %146 : vector<16x32xf32>
    %cst_53 = arith.constant dense<0.000000e+00> : vector<16xf32>
    %148 = vector.multi_reduction <add>, %147, %cst_53 [1] : vector<16x32xf32> to vector<16xf32>
    %149 = vector.shape_cast %148 : vector<16xf32> to vector<16x1xf32>
    %cst_54 = arith.constant 3.200000e+01 : f32
    %150 = vector.broadcast %cst_54 : f32 to vector<16x1xf32>
    %151 = arith.divf %149, %150 : vector<16x1xf32>
    %152 = vector.broadcast %144 : vector<16x1xf32> to vector<16x32xf32>
    %153 = arith.subf %136, %152 : vector<16x32xf32>
    %cst_55 = arith.constant 9.99999974E-6 : f32
    %154 = vector.broadcast %cst_55 : f32 to vector<16x1xf32>
    %155 = arith.addf %151, %154 : vector<16x1xf32>
    %156 = math.rsqrt %155 : vector<16x1xf32>
    %157 = vector.broadcast %156 : vector<16x1xf32> to vector<16x32xf32>
    %158 = arith.mulf %153, %157 : vector<16x32xf32>
    %159 = vector.broadcast %138 : vector<1x32xf32> to vector<16x32xf32>
    %160 = arith.mulf %158, %159 : vector<16x32xf32>
    %161 = vector.broadcast %140 : vector<1x32xf32> to vector<16x32xf32>
    %162 = arith.addf %160, %161 : vector<16x32xf32>
    %163 = arith.truncf %162 : vector<16x32xf32> to vector<16x32xbf16>
    %c0_56 = arith.constant 0 : index
    %c0_57 = arith.constant 0 : index
    %c0_58 = arith.constant 0 : index
    %164 = vector.load %arg9[%c0_56, %c0_57, %c0_58] : memref<2x32x128xbf16, #tpu.memory_space<vmem>>, vector<1x32x128xbf16>
    %165 = vector.shape_cast %164 : vector<1x32x128xbf16> to vector<32x128xbf16>
    %cst_59 = arith.constant dense<0.000000e+00> : vector<16x128xf32>
    %166 = tpu.matmul %163, %165, %cst_59 {dimension_numbers = #tpu.dot_dimension_numbers<[1], [0], [0], [1], [0, 0, 1, 1], [], []>} : vector<16x32xbf16>, vector<32x128xbf16>, vector<16x128xf32> -> vector<16x128xf32>
    %c0_60 = arith.constant 0 : index
    %c0_61 = arith.constant 0 : index
    %c0_62 = arith.constant 0 : index
    %167 = vector.load %arg10[%c0_60, %c0_61, %c0_62] : memref<2x1x128xf32, #tpu.memory_space<vmem>>, vector<1x1x128xf32>
    %168 = vector.shape_cast %167 : vector<1x1x128xf32> to vector<1x128xf32>
    %169 = vector.broadcast %168 : vector<1x128xf32> to vector<16x128xf32>
    %170 = arith.addf %166, %169 : vector<16x128xf32>
    %cst_63 = arith.constant 1.702000e+00 : f32
    %171 = vector.broadcast %cst_63 : f32 to vector<16x128xf32>
    %172 = arith.mulf %171, %170 : vector<16x128xf32>
    %173 = arith.negf %172 : vector<16x128xf32>
    %174 = math.exp %173 : vector<16x128xf32>
    %cst_64 = arith.constant 1.000000e+00 : f32
    %175 = vector.broadcast %cst_64 : f32 to vector<16x128xf32>
    %176 = arith.addf %175, %174 : vector<16x128xf32>
    %177 = arith.divf %175, %176 : vector<16x128xf32>
    %178 = arith.mulf %170, %177 : vector<16x128xf32>
    %179 = arith.truncf %178 : vector<16x128xf32> to vector<16x128xbf16>
    %c0_65 = arith.constant 0 : index
    %c0_66 = arith.constant 0 : index
    %c0_67 = arith.constant 0 : index
    %180 = vector.load %arg11[%c0_65, %c0_66, %c0_67] : memref<2x128x32xbf16, #tpu.memory_space<vmem>>, vector<1x128x32xbf16>
    %181 = vector.shape_cast %180 : vector<1x128x32xbf16> to vector<128x32xbf16>
    %cst_68 = arith.constant dense<0.000000e+00> : vector<16x32xf32>
    %182 = tpu.matmul %179, %181, %cst_68 {dimension_numbers = #tpu.dot_dimension_numbers<[1], [0], [0], [1], [0, 0, 1, 1], [], []>} : vector<16x128xbf16>, vector<128x32xbf16>, vector<16x32xf32> -> vector<16x32xf32>
    %183 = arith.addf %136, %182 : vector<16x32xf32>
    %c0_69 = arith.constant 0 : index
    %c0_70 = arith.constant 0 : index
    %c0_71 = arith.constant 0 : index
    %184 = vector.load %arg12[%c0_69, %c0_70, %c0_71] : memref<2x1x32xf32, #tpu.memory_space<vmem>>, vector<1x1x32xf32>
    %185 = vector.shape_cast %184 : vector<1x1x32xf32> to vector<1x32xf32>
    %186 = vector.broadcast %185 : vector<1x32xf32> to vector<16x32xf32>
    %187 = arith.addf %183, %186 : vector<16x32xf32>
    %c1 = arith.constant 1 : index
    %c0_72 = arith.constant 0 : index
    %c0_73 = arith.constant 0 : index
    %188 = vector.load %arg7[%c1, %c0_72, %c0_73] : memref<2x1x32xf32, #tpu.memory_space<vmem>>, vector<1x1x32xf32>
    %189 = vector.shape_cast %188 : vector<1x1x32xf32> to vector<1x32xf32>
    %c1_74 = arith.constant 1 : index
    %c0_75 = arith.constant 0 : index
    %c0_76 = arith.constant 0 : index
    %190 = vector.load %arg8[%c1_74, %c0_75, %c0_76] : memref<2x1x32xf32, #tpu.memory_space<vmem>>, vector<1x1x32xf32>
    %191 = vector.shape_cast %190 : vector<1x1x32xf32> to vector<1x32xf32>
    %cst_77 = arith.constant dense<0.000000e+00> : vector<16xf32>
    %192 = vector.multi_reduction <add>, %187, %cst_77 [1] : vector<16x32xf32> to vector<16xf32>
    %193 = vector.shape_cast %192 : vector<16xf32> to vector<16x1xf32>
    %cst_78 = arith.constant 3.200000e+01 : f32
    %194 = vector.broadcast %cst_78 : f32 to vector<16x1xf32>
    %195 = arith.divf %193, %194 : vector<16x1xf32>
    %196 = vector.broadcast %195 : vector<16x1xf32> to vector<16x32xf32>
    %197 = arith.subf %187, %196 : vector<16x32xf32>
    %198 = arith.mulf %197, %197 : vector<16x32xf32>
    %cst_79 = arith.constant dense<0.000000e+00> : vector<16xf32>
    %199 = vector.multi_reduction <add>, %198, %cst_79 [1] : vector<16x32xf32> to vector<16xf32>
    %200 = vector.shape_cast %199 : vector<16xf32> to vector<16x1xf32>
    %cst_80 = arith.constant 3.200000e+01 : f32
    %201 = vector.broadcast %cst_80 : f32 to vector<16x1xf32>
    %202 = arith.divf %200, %201 : vector<16x1xf32>
    %203 = vector.broadcast %195 : vector<16x1xf32> to vector<16x32xf32>
    %204 = arith.subf %187, %203 : vector<16x32xf32>
    %cst_81 = arith.constant 9.99999974E-6 : f32
    %205 = vector.broadcast %cst_81 : f32 to vector<16x1xf32>
    %206 = arith.addf %202, %205 : vector<16x1xf32>
    %207 = math.rsqrt %206 : vector<16x1xf32>
    %208 = vector.broadcast %207 : vector<16x1xf32> to vector<16x32xf32>
    %209 = arith.mulf %204, %208 : vector<16x32xf32>
    %210 = vector.broadcast %189 : vector<1x32xf32> to vector<16x32xf32>
    %211 = arith.mulf %209, %210 : vector<16x32xf32>
    %212 = vector.broadcast %191 : vector<1x32xf32> to vector<16x32xf32>
    %213 = arith.addf %211, %212 : vector<16x32xf32>
    %214 = arith.truncf %213 : vector<16x32xf32> to vector<16x32xbf16>
    %c1_82 = arith.constant 1 : index
    %c0_83 = arith.constant 0 : index
    %c0_84 = arith.constant 0 : index
    %215 = vector.load %arg3[%c1_82, %c0_83, %c0_84] : memref<2x32x96xbf16, #tpu.memory_space<vmem>>, vector<1x32x96xbf16>
    %216 = vector.shape_cast %215 : vector<1x32x96xbf16> to vector<32x96xbf16>
    %cst_85 = arith.constant dense<0.000000e+00> : vector<16x96xf32>
    %217 = tpu.matmul %214, %216, %cst_85 {dimension_numbers = #tpu.dot_dimension_numbers<[1], [0], [0], [1], [0, 0, 1, 1], [], []>} : vector<16x32xbf16>, vector<32x96xbf16>, vector<16x96xf32> -> vector<16x96xf32>
    %c1_86 = arith.constant 1 : index
    %c0_87 = arith.constant 0 : index
    %c0_88 = arith.constant 0 : index
    %218 = vector.load %arg4[%c1_86, %c0_87, %c0_88] : memref<2x1x96xf32, #tpu.memory_space<vmem>>, vector<1x1x96xf32>
    %219 = vector.shape_cast %218 : vector<1x1x96xf32> to vector<1x96xf32>
    %220 = vector.broadcast %219 : vector<1x96xf32> to vector<16x96xf32>
    %221 = arith.addf %217, %220 : vector<16x96xf32>
    %222 = vector.extract_strided_slice %221 {offsets = [0, 0], sizes = [16, 8], strides = [1, 1]} : vector<16x96xf32> to vector<16x8xf32>
    %223 = vector.extract_strided_slice %221 {offsets = [0, 32], sizes = [16, 8], strides = [1, 1]} : vector<16x96xf32> to vector<16x8xf32>
    %224 = vector.extract_strided_slice %221 {offsets = [0, 64], sizes = [16, 8], strides = [1, 1]} : vector<16x96xf32> to vector<16x8xf32>
    %225 = arith.truncf %222 : vector<16x8xf32> to vector<16x8xbf16>
    %226 = arith.truncf %223 : vector<16x8xf32> to vector<16x8xbf16>
    %cst_89 = arith.constant dense<0.000000e+00> : vector<16x16xf32>
    %227 = tpu.matmul %225, %226, %cst_89 {dimension_numbers = #tpu.dot_dimension_numbers<[1], [1], [0], [0], [0, 0, 1, 0], [], []>} : vector<16x8xbf16>, vector<16x8xbf16>, vector<16x16xf32> -> vector<16x16xf32>
    %228 = arith.addf %227, %16 : vector<16x16xf32>
    %cst_90 = arith.constant dense<0xFF800000> : vector<16xf32>
    %229 = vector.multi_reduction <maximumf>, %228, %cst_90 [1] : vector<16x16xf32> to vector<16xf32>
    %230 = vector.shape_cast %229 : vector<16xf32> to vector<16x1xf32>
    %231 = vector.broadcast %230 : vector<16x1xf32> to vector<16x16xf32>
    %232 = arith.subf %228, %231 : vector<16x16xf32>
    %233 = math.exp %232 : vector<16x16xf32>
    %cst_91 = arith.constant dense<0.000000e+00> : vector<16xf32>
    %234 = vector.multi_reduction <add>, %233, %cst_91 [1] : vector<16x16xf32> to vector<16xf32>
    %235 = vector.shape_cast %234 : vector<16xf32> to vector<16x1xf32>
    %236 = vector.broadcast %235 : vector<16x1xf32> to vector<16x16xf32>
    %237 = arith.divf %233, %236 : vector<16x16xf32>
    %238 = arith.truncf %237 : vector<16x16xf32> to vector<16x16xbf16>
    %239 = arith.truncf %224 : vector<16x8xf32> to vector<16x8xbf16>
    %cst_92 = arith.constant dense<0.000000e+00> : vector<16x8xf32>
    %240 = tpu.matmul %238, %239, %cst_92 {dimension_numbers = #tpu.dot_dimension_numbers<[1], [0], [0], [1], [0, 0, 1, 1], [], []>} : vector<16x16xbf16>, vector<16x8xbf16>, vector<16x8xf32> -> vector<16x8xf32>
    %241 = vector.extract_strided_slice %221 {offsets = [0, 8], sizes = [16, 8], strides = [1, 1]} : vector<16x96xf32> to vector<16x8xf32>
    %242 = vector.extract_strided_slice %221 {offsets = [0, 40], sizes = [16, 8], strides = [1, 1]} : vector<16x96xf32> to vector<16x8xf32>
    %243 = vector.extract_strided_slice %221 {offsets = [0, 72], sizes = [16, 8], strides = [1, 1]} : vector<16x96xf32> to vector<16x8xf32>
    %244 = arith.truncf %241 : vector<16x8xf32> to vector<16x8xbf16>
    %245 = arith.truncf %242 : vector<16x8xf32> to vector<16x8xbf16>
    %cst_93 = arith.constant dense<0.000000e+00> : vector<16x16xf32>
    %246 = tpu.matmul %244, %245, %cst_93 {dimension_numbers = #tpu.dot_dimension_numbers<[1], [1], [0], [0], [0, 0, 1, 0], [], []>} : vector<16x8xbf16>, vector<16x8xbf16>, vector<16x16xf32> -> vector<16x16xf32>
    %247 = arith.addf %246, %16 : vector<16x16xf32>
    %cst_94 = arith.constant dense<0xFF800000> : vector<16xf32>
    %248 = vector.multi_reduction <maximumf>, %247, %cst_94 [1] : vector<16x16xf32> to vector<16xf32>
    %249 = vector.shape_cast %248 : vector<16xf32> to vector<16x1xf32>
    %250 = vector.broadcast %249 : vector<16x1xf32> to vector<16x16xf32>
    %251 = arith.subf %247, %250 : vector<16x16xf32>
    %252 = math.exp %251 : vector<16x16xf32>
    %cst_95 = arith.constant dense<0.000000e+00> : vector<16xf32>
    %253 = vector.multi_reduction <add>, %252, %cst_95 [1] : vector<16x16xf32> to vector<16xf32>
    %254 = vector.shape_cast %253 : vector<16xf32> to vector<16x1xf32>
    %255 = vector.broadcast %254 : vector<16x1xf32> to vector<16x16xf32>
    %256 = arith.divf %252, %255 : vector<16x16xf32>
    %257 = arith.truncf %256 : vector<16x16xf32> to vector<16x16xbf16>
    %258 = arith.truncf %243 : vector<16x8xf32> to vector<16x8xbf16>
    %cst_96 = arith.constant dense<0.000000e+00> : vector<16x8xf32>
    %259 = tpu.matmul %257, %258, %cst_96 {dimension_numbers = #tpu.dot_dimension_numbers<[1], [0], [0], [1], [0, 0, 1, 1], [], []>} : vector<16x16xbf16>, vector<16x8xbf16>, vector<16x8xf32> -> vector<16x8xf32>
    %260 = vector.extract_strided_slice %221 {offsets = [0, 16], sizes = [16, 8], strides = [1, 1]} : vector<16x96xf32> to vector<16x8xf32>
    %261 = vector.extract_strided_slice %221 {offsets = [0, 48], sizes = [16, 8], strides = [1, 1]} : vector<16x96xf32> to vector<16x8xf32>
    %262 = vector.extract_strided_slice %221 {offsets = [0, 80], sizes = [16, 8], strides = [1, 1]} : vector<16x96xf32> to vector<16x8xf32>
    %263 = arith.truncf %260 : vector<16x8xf32> to vector<16x8xbf16>
    %264 = arith.truncf %261 : vector<16x8xf32> to vector<16x8xbf16>
    %cst_97 = arith.constant dense<0.000000e+00> : vector<16x16xf32>
    %265 = tpu.matmul %263, %264, %cst_97 {dimension_numbers = #tpu.dot_dimension_numbers<[1], [1], [0], [0], [0, 0, 1, 0], [], []>} : vector<16x8xbf16>, vector<16x8xbf16>, vector<16x16xf32> -> vector<16x16xf32>
    %266 = arith.addf %265, %16 : vector<16x16xf32>
    %cst_98 = arith.constant dense<0xFF800000> : vector<16xf32>
    %267 = vector.multi_reduction <maximumf>, %266, %cst_98 [1] : vector<16x16xf32> to vector<16xf32>
    %268 = vector.shape_cast %267 : vector<16xf32> to vector<16x1xf32>
    %269 = vector.broadcast %268 : vector<16x1xf32> to vector<16x16xf32>
    %270 = arith.subf %266, %269 : vector<16x16xf32>
    %271 = math.exp %270 : vector<16x16xf32>
    %cst_99 = arith.constant dense<0.000000e+00> : vector<16xf32>
    %272 = vector.multi_reduction <add>, %271, %cst_99 [1] : vector<16x16xf32> to vector<16xf32>
    %273 = vector.shape_cast %272 : vector<16xf32> to vector<16x1xf32>
    %274 = vector.broadcast %273 : vector<16x1xf32> to vector<16x16xf32>
    %275 = arith.divf %271, %274 : vector<16x16xf32>
    %276 = arith.truncf %275 : vector<16x16xf32> to vector<16x16xbf16>
    %277 = arith.truncf %262 : vector<16x8xf32> to vector<16x8xbf16>
    %cst_100 = arith.constant dense<0.000000e+00> : vector<16x8xf32>
    %278 = tpu.matmul %276, %277, %cst_100 {dimension_numbers = #tpu.dot_dimension_numbers<[1], [0], [0], [1], [0, 0, 1, 1], [], []>} : vector<16x16xbf16>, vector<16x8xbf16>, vector<16x8xf32> -> vector<16x8xf32>
    %279 = vector.extract_strided_slice %221 {offsets = [0, 24], sizes = [16, 8], strides = [1, 1]} : vector<16x96xf32> to vector<16x8xf32>
    %280 = vector.extract_strided_slice %221 {offsets = [0, 56], sizes = [16, 8], strides = [1, 1]} : vector<16x96xf32> to vector<16x8xf32>
    %281 = vector.extract_strided_slice %221 {offsets = [0, 88], sizes = [16, 8], strides = [1, 1]} : vector<16x96xf32> to vector<16x8xf32>
    %282 = arith.truncf %279 : vector<16x8xf32> to vector<16x8xbf16>
    %283 = arith.truncf %280 : vector<16x8xf32> to vector<16x8xbf16>
    %cst_101 = arith.constant dense<0.000000e+00> : vector<16x16xf32>
    %284 = tpu.matmul %282, %283, %cst_101 {dimension_numbers = #tpu.dot_dimension_numbers<[1], [1], [0], [0], [0, 0, 1, 0], [], []>} : vector<16x8xbf16>, vector<16x8xbf16>, vector<16x16xf32> -> vector<16x16xf32>
    %285 = arith.addf %284, %16 : vector<16x16xf32>
    %cst_102 = arith.constant dense<0xFF800000> : vector<16xf32>
    %286 = vector.multi_reduction <maximumf>, %285, %cst_102 [1] : vector<16x16xf32> to vector<16xf32>
    %287 = vector.shape_cast %286 : vector<16xf32> to vector<16x1xf32>
    %288 = vector.broadcast %287 : vector<16x1xf32> to vector<16x16xf32>
    %289 = arith.subf %285, %288 : vector<16x16xf32>
    %290 = math.exp %289 : vector<16x16xf32>
    %cst_103 = arith.constant dense<0.000000e+00> : vector<16xf32>
    %291 = vector.multi_reduction <add>, %290, %cst_103 [1] : vector<16x16xf32> to vector<16xf32>
    %292 = vector.shape_cast %291 : vector<16xf32> to vector<16x1xf32>
    %293 = vector.broadcast %292 : vector<16x1xf32> to vector<16x16xf32>
    %294 = arith.divf %290, %293 : vector<16x16xf32>
    %295 = arith.truncf %294 : vector<16x16xf32> to vector<16x16xbf16>
    %296 = arith.truncf %281 : vector<16x8xf32> to vector<16x8xbf16>
    %cst_104 = arith.constant dense<0.000000e+00> : vector<16x8xf32>
    %297 = tpu.matmul %295, %296, %cst_104 {dimension_numbers = #tpu.dot_dimension_numbers<[1], [0], [0], [1], [0, 0, 1, 1], [], []>} : vector<16x16xbf16>, vector<16x8xbf16>, vector<16x8xf32> -> vector<16x8xf32>
    %298 = tpu.concatenate %240, %259, %278, %297 in 1 : vector<16x8xf32>, vector<16x8xf32>, vector<16x8xf32>, vector<16x8xf32> -> vector<16x32xf32>
    %299 = arith.truncf %298 : vector<16x32xf32> to vector<16x32xbf16>
    %c1_105 = arith.constant 1 : index
    %c0_106 = arith.constant 0 : index
    %c0_107 = arith.constant 0 : index
    %300 = vector.load %arg5[%c1_105, %c0_106, %c0_107] : memref<2x32x32xbf16, #tpu.memory_space<vmem>>, vector<1x32x32xbf16>
    %301 = vector.shape_cast %300 : vector<1x32x32xbf16> to vector<32x32xbf16>
    %cst_108 = arith.constant dense<0.000000e+00> : vector<16x32xf32>
    %302 = tpu.matmul %299, %301, %cst_108 {dimension_numbers = #tpu.dot_dimension_numbers<[1], [0], [0], [1], [0, 0, 1, 1], [], []>} : vector<16x32xbf16>, vector<32x32xbf16>, vector<16x32xf32> -> vector<16x32xf32>
    %303 = arith.addf %187, %302 : vector<16x32xf32>
    %c1_109 = arith.constant 1 : index
    %c0_110 = arith.constant 0 : index
    %c0_111 = arith.constant 0 : index
    %304 = vector.load %arg6[%c1_109, %c0_110, %c0_111] : memref<2x1x32xf32, #tpu.memory_space<vmem>>, vector<1x1x32xf32>
    %305 = vector.shape_cast %304 : vector<1x1x32xf32> to vector<1x32xf32>
    %306 = vector.broadcast %305 : vector<1x32xf32> to vector<16x32xf32>
    %307 = arith.addf %303, %306 : vector<16x32xf32>
    %c1_112 = arith.constant 1 : index
    %c0_113 = arith.constant 0 : index
    %c0_114 = arith.constant 0 : index
    %308 = vector.load %arg13[%c1_112, %c0_113, %c0_114] : memref<2x1x32xf32, #tpu.memory_space<vmem>>, vector<1x1x32xf32>
    %309 = vector.shape_cast %308 : vector<1x1x32xf32> to vector<1x32xf32>
    %c1_115 = arith.constant 1 : index
    %c0_116 = arith.constant 0 : index
    %c0_117 = arith.constant 0 : index
    %310 = vector.load %arg14[%c1_115, %c0_116, %c0_117] : memref<2x1x32xf32, #tpu.memory_space<vmem>>, vector<1x1x32xf32>
    %311 = vector.shape_cast %310 : vector<1x1x32xf32> to vector<1x32xf32>
    %cst_118 = arith.constant dense<0.000000e+00> : vector<16xf32>
    %312 = vector.multi_reduction <add>, %307, %cst_118 [1] : vector<16x32xf32> to vector<16xf32>
    %313 = vector.shape_cast %312 : vector<16xf32> to vector<16x1xf32>
    %cst_119 = arith.constant 3.200000e+01 : f32
    %314 = vector.broadcast %cst_119 : f32 to vector<16x1xf32>
    %315 = arith.divf %313, %314 : vector<16x1xf32>
    %316 = vector.broadcast %315 : vector<16x1xf32> to vector<16x32xf32>
    %317 = arith.subf %307, %316 : vector<16x32xf32>
    %318 = arith.mulf %317, %317 : vector<16x32xf32>
    %cst_120 = arith.constant dense<0.000000e+00> : vector<16xf32>
    %319 = vector.multi_reduction <add>, %318, %cst_120 [1] : vector<16x32xf32> to vector<16xf32>
    %320 = vector.shape_cast %319 : vector<16xf32> to vector<16x1xf32>
    %cst_121 = arith.constant 3.200000e+01 : f32
    %321 = vector.broadcast %cst_121 : f32 to vector<16x1xf32>
    %322 = arith.divf %320, %321 : vector<16x1xf32>
    %323 = vector.broadcast %315 : vector<16x1xf32> to vector<16x32xf32>
    %324 = arith.subf %307, %323 : vector<16x32xf32>
    %cst_122 = arith.constant 9.99999974E-6 : f32
    %325 = vector.broadcast %cst_122 : f32 to vector<16x1xf32>
    %326 = arith.addf %322, %325 : vector<16x1xf32>
    %327 = math.rsqrt %326 : vector<16x1xf32>
    %328 = vector.broadcast %327 : vector<16x1xf32> to vector<16x32xf32>
    %329 = arith.mulf %324, %328 : vector<16x32xf32>
    %330 = vector.broadcast %309 : vector<1x32xf32> to vector<16x32xf32>
    %331 = arith.mulf %329, %330 : vector<16x32xf32>
    %332 = vector.broadcast %311 : vector<1x32xf32> to vector<16x32xf32>
    %333 = arith.addf %331, %332 : vector<16x32xf32>
    %334 = arith.truncf %333 : vector<16x32xf32> to vector<16x32xbf16>
    %c1_123 = arith.constant 1 : index
    %c0_124 = arith.constant 0 : index
    %c0_125 = arith.constant 0 : index
    %335 = vector.load %arg9[%c1_123, %c0_124, %c0_125] : memref<2x32x128xbf16, #tpu.memory_space<vmem>>, vector<1x32x128xbf16>
    %336 = vector.shape_cast %335 : vector<1x32x128xbf16> to vector<32x128xbf16>
    %cst_126 = arith.constant dense<0.000000e+00> : vector<16x128xf32>
    %337 = tpu.matmul %334, %336, %cst_126 {dimension_numbers = #tpu.dot_dimension_numbers<[1], [0], [0], [1], [0, 0, 1, 1], [], []>} : vector<16x32xbf16>, vector<32x128xbf16>, vector<16x128xf32> -> vector<16x128xf32>
    %c1_127 = arith.constant 1 : index
    %c0_128 = arith.constant 0 : index
    %c0_129 = arith.constant 0 : index
    %338 = vector.load %arg10[%c1_127, %c0_128, %c0_129] : memref<2x1x128xf32, #tpu.memory_space<vmem>>, vector<1x1x128xf32>
    %339 = vector.shape_cast %338 : vector<1x1x128xf32> to vector<1x128xf32>
    %340 = vector.broadcast %339 : vector<1x128xf32> to vector<16x128xf32>
    %341 = arith.addf %337, %340 : vector<16x128xf32>
    %cst_130 = arith.constant 1.702000e+00 : f32
    %342 = vector.broadcast %cst_130 : f32 to vector<16x128xf32>
    %343 = arith.mulf %342, %341 : vector<16x128xf32>
    %344 = arith.negf %343 : vector<16x128xf32>
    %345 = math.exp %344 : vector<16x128xf32>
    %cst_131 = arith.constant 1.000000e+00 : f32
    %346 = vector.broadcast %cst_131 : f32 to vector<16x128xf32>
    %347 = arith.addf %346, %345 : vector<16x128xf32>
    %348 = arith.divf %346, %347 : vector<16x128xf32>
    %349 = arith.mulf %341, %348 : vector<16x128xf32>
    %350 = arith.truncf %349 : vector<16x128xf32> to vector<16x128xbf16>
    %c1_132 = arith.constant 1 : index
    %c0_133 = arith.constant 0 : index
    %c0_134 = arith.constant 0 : index
    %351 = vector.load %arg11[%c1_132, %c0_133, %c0_134] : memref<2x128x32xbf16, #tpu.memory_space<vmem>>, vector<1x128x32xbf16>
    %352 = vector.shape_cast %351 : vector<1x128x32xbf16> to vector<128x32xbf16>
    %cst_135 = arith.constant dense<0.000000e+00> : vector<16x32xf32>
    %353 = tpu.matmul %350, %352, %cst_135 {dimension_numbers = #tpu.dot_dimension_numbers<[1], [0], [0], [1], [0, 0, 1, 1], [], []>} : vector<16x128xbf16>, vector<128x32xbf16>, vector<16x32xf32> -> vector<16x32xf32>
    %354 = arith.addf %307, %353 : vector<16x32xf32>
    %c1_136 = arith.constant 1 : index
    %c0_137 = arith.constant 0 : index
    %c0_138 = arith.constant 0 : index
    %355 = vector.load %arg12[%c1_136, %c0_137, %c0_138] : memref<2x1x32xf32, #tpu.memory_space<vmem>>, vector<1x1x32xf32>
    %356 = vector.shape_cast %355 : vector<1x1x32xf32> to vector<1x32xf32>
    %357 = vector.broadcast %356 : vector<1x32xf32> to vector<16x32xf32>
    %358 = arith.addf %354, %357 : vector<16x32xf32>
    %c0_139 = arith.constant 0 : index
    %c0_140 = arith.constant 0 : index
    %359 = vector.load %arg15[%c0_139, %c0_140] : memref<1x32xf32, #tpu.memory_space<vmem>>, vector<1x32xf32>
    %c0_141 = arith.constant 0 : index
    %c0_142 = arith.constant 0 : index
    %360 = vector.load %arg16[%c0_141, %c0_142] : memref<1x32xf32, #tpu.memory_space<vmem>>, vector<1x32xf32>
    %cst_143 = arith.constant dense<0.000000e+00> : vector<16xf32>
    %361 = vector.multi_reduction <add>, %358, %cst_143 [1] : vector<16x32xf32> to vector<16xf32>
    %362 = vector.shape_cast %361 : vector<16xf32> to vector<16x1xf32>
    %cst_144 = arith.constant 3.200000e+01 : f32
    %363 = vector.broadcast %cst_144 : f32 to vector<16x1xf32>
    %364 = arith.divf %362, %363 : vector<16x1xf32>
    %365 = vector.broadcast %364 : vector<16x1xf32> to vector<16x32xf32>
    %366 = arith.subf %358, %365 : vector<16x32xf32>
    %367 = arith.mulf %366, %366 : vector<16x32xf32>
    %cst_145 = arith.constant dense<0.000000e+00> : vector<16xf32>
    %368 = vector.multi_reduction <add>, %367, %cst_145 [1] : vector<16x32xf32> to vector<16xf32>
    %369 = vector.shape_cast %368 : vector<16xf32> to vector<16x1xf32>
    %cst_146 = arith.constant 3.200000e+01 : f32
    %370 = vector.broadcast %cst_146 : f32 to vector<16x1xf32>
    %371 = arith.divf %369, %370 : vector<16x1xf32>
    %372 = vector.broadcast %364 : vector<16x1xf32> to vector<16x32xf32>
    %373 = arith.subf %358, %372 : vector<16x32xf32>
    %cst_147 = arith.constant 9.99999974E-6 : f32
    %374 = vector.broadcast %cst_147 : f32 to vector<16x1xf32>
    %375 = arith.addf %371, %374 : vector<16x1xf32>
    %376 = math.rsqrt %375 : vector<16x1xf32>
    %377 = vector.broadcast %376 : vector<16x1xf32> to vector<16x32xf32>
    %378 = arith.mulf %373, %377 : vector<16x32xf32>
    %379 = vector.broadcast %359 : vector<1x32xf32> to vector<16x32xf32>
    %380 = arith.mulf %378, %379 : vector<16x32xf32>
    %381 = vector.broadcast %360 : vector<1x32xf32> to vector<16x32xf32>
    %382 = arith.addf %380, %381 : vector<16x32xf32>
    %cst_148 = arith.constant 0.000000e+00 : f32
    %383 = vector.broadcast %cst_148 : f32 to vector<16x96xf32>
    %384 = tpu.concatenate %382, %383 in 1 : vector<16x32xf32>, vector<16x96xf32> -> vector<16x128xf32>
    %c0_149 = arith.constant 0 : index
    %c0_150 = arith.constant 0 : index
    %385 = vector.load %arg18[%c0_149, %c0_150] : memref<16x128xf32, #tpu.memory_space<vmem>>, vector<16x128xf32>
    tpu.vector_store %arg18[%c0_149, %c0_150], %384 {strides = array<i32>} : memref<16x128xf32, #tpu.memory_space<vmem>>, vector<16x128xf32>,
    %c0_151 = arith.constant 0 : index
    %c0_152 = arith.constant 0 : index
    %386 = vector.load %arg2[%c0_151, %c0_152] : memref<2x16xf32, #tpu.memory_space<vmem>>, vector<2x16xf32>
    %cst_153 = arith.constant dense<0.000000e+00> : vector<2x32xf32>
    %387 = tpu.matmul %386, %382, %cst_153 {dimension_numbers = #tpu.dot_dimension_numbers<[1], [0], [0], [1], [0, 0, 1, 1], [], []>} : vector<2x16xf32>, vector<16x32xf32>, vector<2x32xf32> -> vector<2x32xf32>
    %c0_154 = arith.constant 0 : index
    %c0_155 = arith.constant 0 : index
    %388 = vector.load %arg17[%c0_154, %c0_155] : memref<32x128xf32, #tpu.memory_space<vmem>>, vector<32x128xf32>
    %cst_156 = arith.constant dense<0.000000e+00> : vector<2x128xf32>
    %389 = tpu.matmul %387, %388, %cst_156 {dimension_numbers = #tpu.dot_dimension_numbers<[1], [0], [0], [1], [0, 0, 1, 1], [], []>} : vector<2x32xf32>, vector<32x128xf32>, vector<2x128xf32> -> vector<2x128xf32>
    %c0_157 = arith.constant 0 : index
    %c0_158 = arith.constant 0 : index
    %390 = vector.load %arg19[%c0_157, %c0_158] : memref<2x128xf32, #tpu.memory_space<vmem>>, vector<2x128xf32>
    tpu.vector_store %arg19[%c0_157, %c0_158], %389 {strides = array<i32>} : memref<2x128xf32, #tpu.memory_space<vmem>>, vector<2x128xf32>,
    return
  }
  func.func @transform_0(%arg0: i32) -> (i32, i32) {
    %c0_i32 = arith.constant 0 : i32
    %c0_i32_0 = arith.constant 0 : i32
    %c0_i32_1 = arith.constant 0 : i32
    return %c0_i32, %c0_i32_0 : i32, i32
  }
  func.func @transform_1(%arg0: i32) -> (i32, i32) {
    %c0_i32 = arith.constant 0 : i32
    %c0_i32_0 = arith.constant 0 : i32
    %c0_i32_1 = arith.constant 0 : i32
    return %c0_i32, %c0_i32_0 : i32, i32
  }
  func.func @transform_2(%arg0: i32) -> (i32, i32, i32) {
    %c0_i32 = arith.constant 0 : i32
    %c0_i32_0 = arith.constant 0 : i32
    %c0_i32_1 = arith.constant 0 : i32
    %c0_i32_2 = arith.constant 0 : i32
    return %c0_i32, %c0_i32_0, %c0_i32_1 : i32, i32, i32
  }
  func.func @transform_3(%arg0: i32) -> (i32, i32, i32) {
    %c0_i32 = arith.constant 0 : i32
    %c0_i32_0 = arith.constant 0 : i32
    %c0_i32_1 = arith.constant 0 : i32
    %c0_i32_2 = arith.constant 0 : i32
    return %c0_i32, %c0_i32_0, %c0_i32_1 : i32, i32, i32
  }
  func.func @transform_4(%arg0: i32) -> (i32, i32, i32) {
    %c0_i32 = arith.constant 0 : i32
    %c0_i32_0 = arith.constant 0 : i32
    %c0_i32_1 = arith.constant 0 : i32
    %c0_i32_2 = arith.constant 0 : i32
    return %c0_i32, %c0_i32_0, %c0_i32_1 : i32, i32, i32
  }
  func.func @transform_5(%arg0: i32) -> (i32, i32, i32) {
    %c0_i32 = arith.constant 0 : i32
    %c0_i32_0 = arith.constant 0 : i32
    %c0_i32_1 = arith.constant 0 : i32
    %c0_i32_2 = arith.constant 0 : i32
    return %c0_i32, %c0_i32_0, %c0_i32_1 : i32, i32, i32
  }
  func.func @transform_6(%arg0: i32) -> (i32, i32, i32) {
    %c0_i32 = arith.constant 0 : i32
    %c0_i32_0 = arith.constant 0 : i32
    %c0_i32_1 = arith.constant 0 : i32
    %c0_i32_2 = arith.constant 0 : i32
    return %c0_i32, %c0_i32_0, %c0_i32_1 : i32, i32, i32
  }
  func.func @transform_7(%arg0: i32) -> (i32, i32, i32) {
    %c0_i32 = arith.constant 0 : i32
    %c0_i32_0 = arith.constant 0 : i32
    %c0_i32_1 = arith.constant 0 : i32
    %c0_i32_2 = arith.constant 0 : i32
    return %c0_i32, %c0_i32_0, %c0_i32_1 : i32, i32, i32
  }
  func.func @transform_8(%arg0: i32) -> (i32, i32, i32) {
    %c0_i32 = arith.constant 0 : i32
    %c0_i32_0 = arith.constant 0 : i32
    %c0_i32_1 = arith.constant 0 : i32
    %c0_i32_2 = arith.constant 0 : i32
    return %c0_i32, %c0_i32_0, %c0_i32_1 : i32, i32, i32
  }
  func.func @transform_9(%arg0: i32) -> (i32, i32, i32) {
    %c0_i32 = arith.constant 0 : i32
    %c0_i32_0 = arith.constant 0 : i32
    %c0_i32_1 = arith.constant 0 : i32
    %c0_i32_2 = arith.constant 0 : i32
    return %c0_i32, %c0_i32_0, %c0_i32_1 : i32, i32, i32
  }
  func.func @transform_10(%arg0: i32) -> (i32, i32, i32) {
    %c0_i32 = arith.constant 0 : i32
    %c0_i32_0 = arith.constant 0 : i32
    %c0_i32_1 = arith.constant 0 : i32
    %c0_i32_2 = arith.constant 0 : i32
    return %c0_i32, %c0_i32_0, %c0_i32_1 : i32, i32, i32
  }
  func.func @transform_11(%arg0: i32) -> (i32, i32, i32) {
    %c0_i32 = arith.constant 0 : i32
    %c0_i32_0 = arith.constant 0 : i32
    %c0_i32_1 = arith.constant 0 : i32
    %c0_i32_2 = arith.constant 0 : i32
    return %c0_i32, %c0_i32_0, %c0_i32_1 : i32, i32, i32
  }
  func.func @transform_12(%arg0: i32) -> (i32, i32, i32) {
    %c0_i32 = arith.constant 0 : i32
    %c0_i32_0 = arith.constant 0 : i32
    %c0_i32_1 = arith.constant 0 : i32
    %c0_i32_2 = arith.constant 0 : i32
    return %c0_i32, %c0_i32_0, %c0_i32_1 : i32, i32, i32
  }
  func.func @transform_13(%arg0: i32) -> (i32, i32, i32) {
    %c0_i32 = arith.constant 0 : i32
    %c0_i32_0 = arith.constant 0 : i32
    %c0_i32_1 = arith.constant 0 : i32
    %c0_i32_2 = arith.constant 0 : i32
    return %c0_i32, %c0_i32_0, %c0_i32_1 : i32, i32, i32
  }
  func.func @transform_14(%arg0: i32) -> (i32, i32) {
    %c0_i32 = arith.constant 0 : i32
    %c0_i32_0 = arith.constant 0 : i32
    %c0_i32_1 = arith.constant 0 : i32
    return %c0_i32, %c0_i32_0 : i32, i32
  }
  func.func @transform_15(%arg0: i32) -> (i32, i32) {
    %c0_i32 = arith.constant 0 : i32
    %c0_i32_0 = arith.constant 0 : i32
    %c0_i32_1 = arith.constant 0 : i32
    return %c0_i32, %c0_i32_0 : i32, i32
  }
  func.func @transform_16(%arg0: i32) -> (i32, i32) {
    %c0_i32 = arith.constant 0 : i32
    %c0_i32_0 = arith.constant 0 : i32
    %c0_i32_1 = arith.constant 0 : i32
    return %c0_i32, %c0_i32_0 : i32, i32
  }
  func.func @transform_17(%arg0: i32) -> (i32, i32) {
    %c0_i32 = arith.constant 0 : i32
    %c0_i32_0 = arith.constant 0 : i32
    %c0_i32_1 = arith.constant 0 : i32
    return %c0_i32, %c0_i32_0 : i32, i32
  }
  func.func @transform_18(%arg0: i32) -> (i32, i32) {
    %c0_i32 = arith.constant 0 : i32
    %c0_i32_0 = arith.constant 0 : i32
    %c0_i32_1 = arith.constant 0 : i32
    return %c0_i32, %c0_i32_0 : i32, i32
  }
}

</mosaic_0001>

<llo_original>
// kernel: clip_forward.1
$region0: #{clip_forward.1}
  #allocation0 [shape = 'u32[]', space=smem, size = 0x4, offset = 0x4, fixed_abs, tag = 'smem constant byte address 0x4 - core index']
  #allocation1 [shape = 'u32[72,128]{1,0:T(1,128)}', space=vmem, size = 0x9000, scoped, tag = 'internal scratch']
  %s0 = inlined_call_operand.vmem [shape: f32[16,32], index: 0, kind: input, shape index: {}]
  %s1 = inlined_call_operand.vmem [shape: f32[2,16], index: 1, kind: input, shape index: {}]
  %s2 = inlined_call_operand.vmem [shape: bf16[2,32,96], index: 2, kind: input, shape index: {}]
  %s3 = inlined_call_operand.vmem [shape: f32[2,1,96], index: 3, kind: input, shape index: {}]
  %s4 = inlined_call_operand.vmem [shape: bf16[2,32,32], index: 4, kind: input, shape index: {}]
  %s5 = inlined_call_operand.vmem [shape: f32[2,1,32], index: 5, kind: input, shape index: {}]
  %s6 = inlined_call_operand.vmem [shape: f32[2,1,32], index: 6, kind: input, shape index: {}]
  %s7 = inlined_call_operand.vmem [shape: f32[2,1,32], index: 7, kind: input, shape index: {}]
  %s8 = inlined_call_operand.vmem [shape: bf16[2,32,128], index: 8, kind: input, shape index: {}]
  %s9 = inlined_call_operand.vmem [shape: f32[2,1,128], index: 9, kind: input, shape index: {}]
  %s10 = inlined_call_operand.vmem [shape: bf16[2,128,32], index: 10, kind: input, shape index: {}]
  %s11 = inlined_call_operand.vmem [shape: f32[2,1,32], index: 11, kind: input, shape index: {}]
  %s12 = inlined_call_operand.vmem [shape: f32[2,1,32], index: 12, kind: input, shape index: {}]
  %s13 = inlined_call_operand.vmem [shape: f32[2,1,32], index: 13, kind: input, shape index: {}]
  %s14 = inlined_call_operand.vmem [shape: f32[1,32], index: 14, kind: input, shape index: {}]
  %s15 = inlined_call_operand.vmem [shape: f32[1,32], index: 15, kind: input, shape index: {}]
  %s16 = inlined_call_operand.vmem [shape: f32[32,128], index: 16, kind: input, shape index: {}]
  %s17 = inlined_call_operand.vmem [shape: f32[16,128], index: 17, kind: output, shape index: {0}]
  %s18 = inlined_call_operand.hbm [shape: f32[2,128], index: 18, kind: output, shape index: {1}]
  %19 = xla_tuple %s17, %s18
  %s20 = sld [smem:[#allocation0]]
  $region86: #{clip_forward.1} parent=0
    _
  %s22 = ssub.s32 1, %s20
  %s23 = scalar_select 0, %s22, %s20
  $region1: #{clip_forward.1} parent=0
    #allocation2 [shape = 'u8[1024]{0}', space=vmem, size = 0x400, scoped, tag = 'output window, operand 1, single buffered']
    #allocation3 [shape = 's32[1]{0}', space=sflag, size = 0x4, scoped, tag = 'scoped memory for clip_forward.1']
    %24 = vsyncpa [#allocation3], 0
    // Predicated region
    $region2: #{clip_forward.1} parent=1 // pred_check
      _
    $region3: #{clip_forward.1} parent=1 // pred_check_branch
      %26 = sbr.rel (0) target = $region5
    $region4: #{clip_forward.1} parent=1 // pred_region
      _
    $region5: #{clip_forward.1} parent=1 // pred_fallthru
      _
    // Predicated region
    $region6: #{clip_forward.1} parent=1 // pred_check
      _
    $region7: #{clip_forward.1} parent=1 // pred_check_branch
      %28 = sbr.rel (0) target = $region9
    $region8: #{clip_forward.1} parent=1 // pred_region
      _
    $region9: #{clip_forward.1} parent=1 // pred_fallthru
      _
    // Predicated region
    $region10: #{clip_forward.1} parent=1 // pred_check
      _
    $region11: #{clip_forward.1} parent=1 // pred_check_branch
      %30 = sbr.rel (0) target = $region13
    $region12: #{clip_forward.1} parent=1 // pred_region
      _
    $region13: #{clip_forward.1} parent=1 // pred_fallthru
      _
    // Predicated region
    $region14: #{clip_forward.1} parent=1 // pred_check
      _
    $region15: #{clip_forward.1} parent=1 // pred_check_branch
      %32 = sbr.rel (0) target = $region17
    $region16: #{clip_forward.1} parent=1 // pred_region
      _
    $region17: #{clip_forward.1} parent=1 // pred_fallthru
      _
    // Predicated region
    $region18: #{clip_forward.1} parent=1 // pred_check
      _
    $region19: #{clip_forward.1} parent=1 // pred_check_branch
      %34 = sbr.rel (0) target = $region21
    $region20: #{clip_forward.1} parent=1 // pred_region
      _
    $region21: #{clip_forward.1} parent=1 // pred_fallthru
      _
    // Predicated region
    $region22: #{clip_forward.1} parent=1 // pred_check
      _
    $region23: #{clip_forward.1} parent=1 // pred_check_branch
      %36 = sbr.rel (0) target = $region25
    $region24: #{clip_forward.1} parent=1 // pred_region
      _
    $region25: #{clip_forward.1} parent=1 // pred_fallthru
      _
    // Predicated region
    $region26: #{clip_forward.1} parent=1 // pred_check
      _
    $region27: #{clip_forward.1} parent=1 // pred_check_branch
      %38 = sbr.rel (0) target = $region29
    $region28: #{clip_forward.1} parent=1 // pred_region
      _
    $region29: #{clip_forward.1} parent=1 // pred_fallthru
      _
    // Predicated region
    $region30: #{clip_forward.1} parent=1 // pred_check
      _
    $region31: #{clip_forward.1} parent=1 // pred_check_branch
      %40 = sbr.rel (0) target = $region33
    $region32: #{clip_forward.1} parent=1 // pred_region
      _
    $region33: #{clip_forward.1} parent=1 // pred_fallthru
      _
    // Predicated region
    $region34: #{clip_forward.1} parent=1 // pred_check
      _
    $region35: #{clip_forward.1} parent=1 // pred_check_branch
      %42 = sbr.rel (0) target = $region37
    $region36: #{clip_forward.1} parent=1 // pred_region
      _
    $region37: #{clip_forward.1} parent=1 // pred_fallthru
      _
    // Predicated region
    $region38: #{clip_forward.1} parent=1 // pred_check
      _
    $region39: #{clip_forward.1} parent=1 // pred_check_branch
      %44 = sbr.rel (0) target = $region41
    $region40: #{clip_forward.1} parent=1 // pred_region
      _
    $region41: #{clip_forward.1} parent=1 // pred_fallthru
      _
    // Predicated region
    $region42: #{clip_forward.1} parent=1 // pred_check
      _
    $region43: #{clip_forward.1} parent=1 // pred_check_branch
      %46 = sbr.rel (0) target = $region45
    $region44: #{clip_forward.1} parent=1 // pred_region
      _
    $region45: #{clip_forward.1} parent=1 // pred_fallthru
      _
    // Predicated region
    $region46: #{clip_forward.1} parent=1 // pred_check
      _
    $region47: #{clip_forward.1} parent=1 // pred_check_branch
      %48 = sbr.rel (0) target = $region49
    $region48: #{clip_forward.1} parent=1 // pred_region
      _
    $region49: #{clip_forward.1} parent=1 // pred_fallthru
      _
    // Predicated region
    $region50: #{clip_forward.1} parent=1 // pred_check
      _
    $region51: #{clip_forward.1} parent=1 // pred_check_branch
      %50 = sbr.rel (0) target = $region53
    $region52: #{clip_forward.1} parent=1 // pred_region
      _
    $region53: #{clip_forward.1} parent=1 // pred_fallthru
      _
    // Predicated region
    $region54: #{clip_forward.1} parent=1 // pred_check
      _
    $region55: #{clip_forward.1} parent=1 // pred_check_branch
      %52 = sbr.rel (0) target = $region57
    $region56: #{clip_forward.1} parent=1 // pred_region
      _
    $region57: #{clip_forward.1} parent=1 // pred_fallthru
      _
    // Predicated region
    $region58: #{clip_forward.1} parent=1 // pred_check
      _
    $region59: #{clip_forward.1} parent=1 // pred_check_branch
      %54 = sbr.rel (0) target = $region61
    $region60: #{clip_forward.1} parent=1 // pred_region
      _
    $region61: #{clip_forward.1} parent=1 // pred_fallthru
      _
    // Predicated region
    $region62: #{clip_forward.1} parent=1 // pred_check
      _
    $region63: #{clip_forward.1} parent=1 // pred_check_branch
      %56 = sbr.rel (0) target = $region65
    $region64: #{clip_forward.1} parent=1 // pred_region
      _
    $region65: #{clip_forward.1} parent=1 // pred_fallthru
      _
    // Predicated region
    $region66: #{clip_forward.1} parent=1 // pred_check
      _
    $region67: #{clip_forward.1} parent=1 // pred_check_branch
      %58 = sbr.rel (0) target = $region69
    $region68: #{clip_forward.1} parent=1 // pred_region
      _
    $region69: #{clip_forward.1} parent=1 // pred_fallthru
      _
    %v60 = vld [vmem:[%s0] sm:$0xff]
    %v61 = vld [vmem:[%s0 + $0x8] sm:$0xff]
    %v62 = vlaneseq
    %v63 = vshrl.u32 %v62, 7
    %v64 = vadd.s32 %v63, 8
    %v65 = vlaneseq
    %v66 = vand.u32 %v65, 127
    %v67 = vshra.s32 %v63, 3
    %v68 = vshra.s32 %v64, 3
    %v69 = vshra.s32 %v66, 3
    %vm70 = vcmp.eq.s32.totalorder %v67, %v69
    %vm71 = vcmp.eq.s32.totalorder %v68, %v69
    %v72 = vand.u32 %v66, 7
    %v73 = vand.u32 %v63, 7
    %v74 = vand.u32 %v64, 7
    %vm75 = vcmp.le.s32.totalorder %v72, %v73
    %vm76 = vcmp.le.s32.totalorder %v72, %v74
    %vm77 = vmand %vm70, %vm75
    %vm78 = vmand %vm71, %vm76
    %v79 = vsel %vm77, 0.0, -1e+30
    %v80 = vsel %vm78, 0.0, -1e+30
    %v81 = vld [vmem:[%s6] sm:$0x1]
    %v82 = vld [vmem:[%s7] sm:$0x1]
    %vm83 = vcmask 261120
    %v84 = vsel %vm83, %v60, 0.0
    %85 = vadd.xlane.f32.xlu0 %v84
    %v86 = vpop.xlane.xlu0 %85
    %v87 = vsel %vm83, %v61, 0.0
    %88 = vadd.xlane.f32.xlu0 %v87
    %v89 = vpop.xlane.xlu0 %88
    %v90 = vrcp.pop 32.0
    %v91 = vmul.f32 32.0, %v90
    %v92 = vsub.f32 1.0, %v91
    %v93 = vmul.f32 %v90, %v92
    %v94 = vadd.f32 %v90, %v93
    %vm95 = vweird.f32 %v90
    %v96 = vsel %vm95, %v90, %v94
    %v97 = vmul.f32 %v86, %v96
    %v98 = vmul.f32 %v89, %v96
    %v99 = vsub.f32 %v60, %v97
    %v100 = vsub.f32 %v61, %v98
    %v101 = vmul.f32 %v99, %v99
    %v102 = vmul.f32 %v100, %v100
    %v103 = vsel %vm83, %v101, 0.0
    %104 = vadd.xlane.f32.xlu0 %v103
    %v105 = vpop.xlane.xlu0 %104
    %v106 = vsel %vm83, %v102, 0.0
    %107 = vadd.xlane.f32.xlu0 %v106
    %v108 = vpop.xlane.xlu0 %107
    %v109 = vmul.f32 %v105, %v96
    %v110 = vmul.f32 %v108, %v96
    %v111 = vadd.f32 %v109, 1e-05
    %v112 = vadd.f32 %v110, 1e-05
    %v113 = vrsqrt.pop %v111
    %v114 = vmul.f32 %v113, %v111
    %v115 = vmul.f32 %v114, %v113
    %v116 = vmul.f32 0.5, %v115
    %v117 = vsub.f32 1.5, %v116
    %v118 = vmul.f32 %v113, %v117
    %vm119 = vweird.f32 %v111
    %vm120 = vweird.f32 %v113
    %vm121 = vmor %vm119, %vm120
    %v122 = vsel %vm121, %v113, %v118
    %v123 = vrsqrt.pop %v112
    %v124 = vmul.f32 %v123, %v112
    %v125 = vmul.f32 %v124, %v123
    %v126 = vmul.f32 0.5, %v125
    %v127 = vsub.f32 1.5, %v126
    %v128 = vmul.f32 %v123, %v127
    %vm129 = vweird.f32 %v112
    %vm130 = vweird.f32 %v123
    %vm131 = vmor %vm129, %vm130
    %v132 = vsel %vm131, %v123, %v128
    %v133 = vmul.f32 %v99, %v122
    %v134 = vmul.f32 %v100, %v132
    %v136 = vperm.slane %v81, 0
    %v138 = vmul.f32 %v133, %v136
    %v139 = vmul.f32 %v134, %v136
    %v141 = vperm.slane %v82, 0
    %v143 = vadd.f32 %v138, %v141
    %v144 = vadd.f32 %v139, %v141
    %v145 = vpack.c.bf16 %v144, %v143
    %v146 = vld [vmem:[%s2] sm:$0xf]
    %v147 = vld [vmem:[%s2 + $0x4] sm:$0xf]
    %v148 = vld [vmem:[%s2 + $0x8] sm:$0xf]
    %v149 = vld [vmem:[%s2 + $0xc] sm:$0xf]
    %v150 = vld [vmem:[%s3] sm:$0x1]
    %v152 = vperm.slane %v150, 0
    %v158 = vunpack.c.l.b16 %v146
    %v159 = vunpack.c.l.b16 %v147
    %v160 = vunpack.c.l.b16 %v148
    %v161 = vunpack.c.l.b16 %v149
    %v162 = vpack.c.b16 %v159, %v158
    %v163 = vpack.c.b16 %v161, %v160
    %v167 = vsel %vm83, %v145, 0
    %169 = vmatpush.bf16.msra.mxu0 0
    %170 = vmatpush.bf16.msra.mxu0 0
    %171 = vmatpush.bf16.msra.mxu0 0
    %172 = vmatpush.bf16.msra.mxu0 0
    %173 = vmatpush.bf16.msra.mxu0 0
    %174 = vmatpush.bf16.msra.mxu0 0
    %175 = vmatpush.bf16.msra.mxu0 %v163
    %176 = vmatpush.bf16.msra.mxu0 %v162
    %177 = vmatmul.bf16.gmra.mxu0 %v167
    %v178 = vpop.f32.mrf.mxu0
    %v179 = vadd.f32 %v152, %v178
    %v180 = vpop.f32.mrf.mxu0
    %v181 = vadd.f32 %v152, %v180
    %182 = vdwg.mxu0
    %v183 = vpack.c.bf16 %v181, %v179
    %185 = vrot.lane.b32.xlu0 %v183, 96
    %v186 = vpop.permute.xlu0 %185
    %vm187 = vcmask 64512
    %v189 = vsel %vm187, %v183, 0
    %v192 = vsel %vm187, %v186, 0
    %194 = vmatpush.bf16.xpose.msra.mxu0 0
    %195 = vmatpush.bf16.xpose.msra.mxu0 0
    %196 = vmatpush.bf16.xpose.msra.mxu0 0
    %197 = vmatpush.bf16.xpose.msra.mxu0 0
    %198 = vmatpush.bf16.xpose.msra.mxu0 0
    %199 = vmatpush.bf16.xpose.msra.mxu0 0
    %200 = vmatpush.bf16.xpose.msra.mxu0 0
    %201 = vmatpush.bf16.xpose.msra.mxu0 %v192
    %202 = vmatmul.bf16.gmra.mxu0 %v189
    %v203 = vpop.f32.mrf.mxu0
    %v204 = vadd.f32 %v79, %v203
    %v205 = vpop.f32.mrf.mxu0
    %v206 = vadd.f32 %v80, %v205
    %207 = vdwg.mxu0
    %vm208 = vcmask 130048
    %v209 = vsel %vm208, %v204, -inf
    %210 = vmax.xlane.f32.xlu0 %v209
    %v211 = vpop.xlane.xlu0 %210
    %v212 = vsel %vm208, %v206, -inf
    %213 = vmax.xlane.f32.xlu0 %v212
    %v214 = vpop.xlane.xlu0 %213
    %v215 = vsub.f32 %v204, %v211
    %v216 = vsub.f32 %v206, %v214
    %v217 = vmul.f32 %v215, 1.442695
    %v218 = vpow.pop %v217
    %v219 = vmul.f32 %v216, 1.442695
    %v220 = vpow.pop %v219
    %v221 = vsel %vm208, %v218, 0.0
    %222 = vadd.xlane.f32.xlu0 %v221
    %v223 = vpop.xlane.xlu0 %222
    %v224 = vsel %vm208, %v220, 0.0
    %225 = vadd.xlane.f32.xlu0 %v224
    %v226 = vpop.xlane.xlu0 %225
    %v227 = vrcp.pop %v223
    %v228 = vmul.f32 %v223, %v227
    %v229 = vsub.f32 1.0, %v228
    %v230 = vmul.f32 %v227, %v229
    %v231 = vadd.f32 %v227, %v230
    %vm232 = vweird.f32 %v223
    %vm233 = vweird.f32 %v227
    %vm234 = vmor %vm232, %vm233
    %v235 = vsel %vm234, %v227, %v231
    %v236 = vand.u32 2147483647, %v223
    %vm237 = vcmp.eq.f32.partialorder %v236, 8.507059e+37
    %v238 = vand.u32 %v223, 2147483648
    %v239 = vor.u32 1.1754944e-38, %v238
    %v240 = vsel %vm237, %v239, %v235
    %v241 = vmul.f32 %v218, %v240
    %v242 = vrcp.pop %v226
    %v243 = vmul.f32 %v226, %v242
    %v244 = vsub.f32 1.0, %v243
    %v245 = vmul.f32 %v242, %v244
    %v246 = vadd.f32 %v242, %v245
    %vm247 = vweird.f32 %v226
    %vm248 = vweird.f32 %v242
    %vm249 = vmor %vm247, %vm248
    %v250 = vsel %vm249, %v242, %v246
    %v251 = vand.u32 2147483647, %v226
    %vm252 = vcmp.eq.f32.partialorder %v251, 8.507059e+37
    %v253 = vand.u32 %v226, 2147483648
    %v254 = vor.u32 1.1754944e-38, %v253
    %v255 = vsel %vm252, %v254, %v250
    %v256 = vmul.f32 %v220, %v255
    %v257 = vpack.c.bf16 %v256, %v241
    %258 = vrot.lane.b32.xlu0 %v183, 64
    %v259 = vpop.permute.xlu0 %258
    %v262 = vsel %vm208, %v257, 0
    %264 = vmatpush.bf16.msra.mxu0 0
    %265 = vmatpush.bf16.msra.mxu0 0
    %266 = vmatpush.bf16.msra.mxu0 0
    %267 = vmatpush.bf16.msra.mxu0 0
    %268 = vmatpush.bf16.msra.mxu0 0
    %269 = vmatpush.bf16.msra.mxu0 0
    %270 = vmatpush.bf16.msra.mxu0 0
    %271 = vmatpush.bf16.msra.mxu0 %v259
    %272 = vmatmul.bf16.gmra.mxu0 %v262
    %v273 = vpop.f32.mrf.mxu0
    %v274 = vadd.f32 0.0, %v273
    %v275 = vpop.f32.mrf.mxu0
    %v276 = vadd.f32 0.0, %v275
    %277 = vdwg.mxu0
    %278 = vrot.lane.b32.xlu0 %v183, 120
    %v279 = vpop.permute.xlu0 %278
    %280 = vrot.lane.b32.xlu0 %v183, 88
    %v281 = vpop.permute.xlu0 %280
    %v283 = vsel %vm187, %v279, 0
    %v286 = vsel %vm187, %v281, 0
    %288 = vmatpush.bf16.xpose.msra.mxu0 0
    %289 = vmatpush.bf16.xpose.msra.mxu0 0
    %290 = vmatpush.bf16.xpose.msra.mxu0 0
    %291 = vmatpush.bf16.xpose.msra.mxu0 0
    %292 = vmatpush.bf16.xpose.msra.mxu0 0
    %293 = vmatpush.bf16.xpose.msra.mxu0 0
    %294 = vmatpush.bf16.xpose.msra.mxu0 0
    %295 = vmatpush.bf16.xpose.msra.mxu0 %v286
    %296 = vmatmul.bf16.gmra.mxu0 %v283
    %v297 = vpop.f32.mrf.mxu0
    %v298 = vadd.f32 %v79, %v297
    %v299 = vpop.f32.mrf.mxu0
    %v300 = vadd.f32 %v80, %v299
    %301 = vdwg.mxu0
    %v302 = vsel %vm208, %v298, -inf
    %303 = vmax.xlane.f32.xlu0 %v302
    %v304 = vpop.xlane.xlu0 %303
    %v305 = vsel %vm208, %v300, -inf
    %306 = vmax.xlane.f32.xlu0 %v305
    %v307 = vpop.xlane.xlu0 %306
    %v308 = vsub.f32 %v298, %v304
    %v309 = vsub.f32 %v300, %v307
    %v310 = vmul.f32 %v308, 1.442695
    %v311 = vpow.pop %v310
    %v312 = vmul.f32 %v309, 1.442695
    %v313 = vpow.pop %v312
    %v314 = vsel %vm208, %v311, 0.0
    %315 = vadd.xlane.f32.xlu0 %v314
    %v316 = vpop.xlane.xlu0 %315
    %v317 = vsel %vm208, %v313, 0.0
    %318 = vadd.xlane.f32.xlu0 %v317
    %v319 = vpop.xlane.xlu0 %318
    %v320 = vrcp.pop %v316
    %v321 = vmul.f32 %v316, %v320
    %v322 = vsub.f32 1.0, %v321
    %v323 = vmul.f32 %v320, %v322
    %v324 = vadd.f32 %v320, %v323
    %vm325 = vweird.f32 %v316
    %vm326 = vweird.f32 %v320
    %vm327 = vmor %vm325, %vm326
    %v328 = vsel %vm327, %v320, %v324
    %v329 = vand.u32 2147483647, %v316
    %vm330 = vcmp.eq.f32.partialorder %v329, 8.507059e+37
    %v331 = vand.u32 %v316, 2147483648
    %v332 = vor.u32 1.1754944e-38, %v331
    %v333 = vsel %vm330, %v332, %v328
    %v334 = vmul.f32 %v311, %v333
    %v335 = vrcp.pop %v319
    %v336 = vmul.f32 %v319, %v335
    %v337 = vsub.f32 1.0, %v336
    %v338 = vmul.f32 %v335, %v337
    %v339 = vadd.f32 %v335, %v338
    %vm340 = vweird.f32 %v319
    %vm341 = vweird.f32 %v335
    %vm342 = vmor %vm340, %vm341
    %v343 = vsel %vm342, %v335, %v339
    %v344 = vand.u32 2147483647, %v319
    %vm345 = vcmp.eq.f32.partialorder %v344, 8.507059e+37
    %v346 = vand.u32 %v319, 2147483648
    %v347 = vor.u32 1.1754944e-38, %v346
    %v348 = vsel %vm345, %v347, %v343
    %v349 = vmul.f32 %v313, %v348
    %v350 = vpack.c.bf16 %v349, %v334
    %351 = vrot.lane.b32.xlu0 %v183, 56
    %v352 = vpop.permute.xlu0 %351
    %v355 = vsel %vm208, %v350, 0
    %357 = vmatpush.bf16.msra.mxu0 0
    %358 = vmatpush.bf16.msra.mxu0 0
    %359 = vmatpush.bf16.msra.mxu0 0
    %360 = vmatpush.bf16.msra.mxu0 0
    %361 = vmatpush.bf16.msra.mxu0 0
    %362 = vmatpush.bf16.msra.mxu0 0
    %363 = vmatpush.bf16.msra.mxu0 0
    %364 = vmatpush.bf16.msra.mxu0 %v352
    %365 = vmatmul.bf16.gmra.mxu0 %v355
    %v366 = vpop.f32.mrf.mxu0
    %v367 = vadd.f32 0.0, %v366
    %v368 = vpop.f32.mrf.mxu0
    %v369 = vadd.f32 0.0, %v368
    %370 = vdwg.mxu0
    %371 = vrot.lane.b32.xlu0 %v183, 112
    %v372 = vpop.permute.xlu0 %371
    %373 = vrot.lane.b32.xlu0 %v183, 80
    %v374 = vpop.permute.xlu0 %373
    %v376 = vsel %vm187, %v372, 0
    %v379 = vsel %vm187, %v374, 0
    %381 = vmatpush.bf16.xpose.msra.mxu0 0
    %382 = vmatpush.bf16.xpose.msra.mxu0 0
    %383 = vmatpush.bf16.xpose.msra.mxu0 0
    %384 = vmatpush.bf16.xpose.msra.mxu0 0
    %385 = vmatpush.bf16.xpose.msra.mxu0 0
    %386 = vmatpush.bf16.xpose.msra.mxu0 0
    %387 = vmatpush.bf16.xpose.msra.mxu0 0
    %388 = vmatpush.bf16.xpose.msra.mxu0 %v379
    %389 = vmatmul.bf16.gmra.mxu0 %v376
    %v390 = vpop.f32.mrf.mxu0
    %v391 = vadd.f32 %v79, %v390
    %v392 = vpop.f32.mrf.mxu0
    %v393 = vadd.f32 %v80, %v392
    %394 = vdwg.mxu0
    %v395 = vsel %vm208, %v391, -inf
    %396 = vmax.xlane.f32.xlu0 %v395
    %v397 = vpop.xlane.xlu0 %396
    %v398 = vsel %vm208, %v393, -inf
    %399 = vmax.xlane.f32.xlu0 %v398
    %v400 = vpop.xlane.xlu0 %399
    %v401 = vsub.f32 %v391, %v397
    %v402 = vsub.f32 %v393, %v400
    %v403 = vmul.f32 %v401, 1.442695
    %v404 = vpow.pop %v403
    %v405 = vmul.f32 %v402, 1.442695
    %v406 = vpow.pop %v405
    %v407 = vsel %vm208, %v404, 0.0
    %408 = vadd.xlane.f32.xlu0 %v407
    %v409 = vpop.xlane.xlu0 %408
    %v410 = vsel %vm208, %v406, 0.0
    %411 = vadd.xlane.f32.xlu0 %v410
    %v412 = vpop.xlane.xlu0 %411
    %v413 = vrcp.pop %v409
    %v414 = vmul.f32 %v409, %v413
    %v415 = vsub.f32 1.0, %v414
    %v416 = vmul.f32 %v413, %v415
    %v417 = vadd.f32 %v413, %v416
    %vm418 = vweird.f32 %v409
    %vm419 = vweird.f32 %v413
    %vm420 = vmor %vm418, %vm419
    %v421 = vsel %vm420, %v413, %v417
    %v422 = vand.u32 2147483647, %v409
    %vm423 = vcmp.eq.f32.partialorder %v422, 8.507059e+37
    %v424 = vand.u32 %v409, 2147483648
    %v425 = vor.u32 1.1754944e-38, %v424
    %v426 = vsel %vm423, %v425, %v421
    %v427 = vmul.f32 %v404, %v426
    %v428 = vrcp.pop %v412
    %v429 = vmul.f32 %v412, %v428
    %v430 = vsub.f32 1.0, %v429
    %v431 = vmul.f32 %v428, %v430
    %v432 = vadd.f32 %v428, %v431
    %vm433 = vweird.f32 %v412
    %vm434 = vweird.f32 %v428
    %vm435 = vmor %vm433, %vm434
    %v436 = vsel %vm435, %v428, %v432
    %v437 = vand.u32 2147483647, %v412
    %vm438 = vcmp.eq.f32.partialorder %v437, 8.507059e+37
    %v439 = vand.u32 %v412, 2147483648
    %v440 = vor.u32 1.1754944e-38, %v439
    %v441 = vsel %vm438, %v440, %v436
    %v442 = vmul.f32 %v406, %v441
    %v443 = vpack.c.bf16 %v442, %v427
    %444 = vrot.lane.b32.xlu0 %v183, 48
    %v445 = vpop.permute.xlu0 %444
    %v448 = vsel %vm208, %v443, 0
    %450 = vmatpush.bf16.msra.mxu0 0
    %451 = vmatpush.bf16.msra.mxu0 0
    %452 = vmatpush.bf16.msra.mxu0 0
    %453 = vmatpush.bf16.msra.mxu0 0
    %454 = vmatpush.bf16.msra.mxu0 0
    %455 = vmatpush.bf16.msra.mxu0 0
    %456 = vmatpush.bf16.msra.mxu0 0
    %457 = vmatpush.bf16.msra.mxu0 %v445
    %458 = vmatmul.bf16.gmra.mxu0 %v448
    %v459 = vpop.f32.mrf.mxu0
    %v460 = vadd.f32 0.0, %v459
    %v461 = vpop.f32.mrf.mxu0
    %v462 = vadd.f32 0.0, %v461
    %463 = vdwg.mxu0
    %464 = vrot.lane.b32.xlu0 %v183, 104
    %v465 = vpop.permute.xlu0 %464
    %466 = vrot.lane.b32.xlu0 %v183, 72
    %v467 = vpop.permute.xlu0 %466
    %v469 = vsel %vm187, %v465, 0
    %v472 = vsel %vm187, %v467, 0
    %474 = vmatpush.bf16.xpose.msra.mxu0 0
    %475 = vmatpush.bf16.xpose.msra.mxu0 0
    %476 = vmatpush.bf16.xpose.msra.mxu0 0
    %477 = vmatpush.bf16.xpose.msra.mxu0 0
    %478 = vmatpush.bf16.xpose.msra.mxu0 0
    %479 = vmatpush.bf16.xpose.msra.mxu0 0
    %480 = vmatpush.bf16.xpose.msra.mxu0 0
    %481 = vmatpush.bf16.xpose.msra.mxu0 %v472
    %482 = vmatmul.bf16.gmra.mxu0 %v469
    %v483 = vpop.f32.mrf.mxu0
    %v484 = vadd.f32 %v79, %v483
    %v485 = vpop.f32.mrf.mxu0
    %v486 = vadd.f32 %v80, %v485
    %487 = vdwg.mxu0
    %v488 = vsel %vm208, %v484, -inf
    %489 = vmax.xlane.f32.xlu0 %v488
    %v490 = vpop.xlane.xlu0 %489
    %v491 = vsel %vm208, %v486, -inf
    %492 = vmax.xlane.f32.xlu0 %v491
    %v493 = vpop.xlane.xlu0 %492
    %v494 = vsub.f32 %v484, %v490
    %v495 = vsub.f32 %v486, %v493
    %v496 = vmul.f32 %v494, 1.442695
    %v497 = vpow.pop %v496
    %v498 = vmul.f32 %v495, 1.442695
    %v499 = vpow.pop %v498
    %v500 = vsel %vm208, %v497, 0.0
    %501 = vadd.xlane.f32.xlu0 %v500
    %v502 = vpop.xlane.xlu0 %501
    %v503 = vsel %vm208, %v499, 0.0
    %504 = vadd.xlane.f32.xlu0 %v503
    %v505 = vpop.xlane.xlu0 %504
    %v506 = vrcp.pop %v502
    %v507 = vmul.f32 %v502, %v506
    %v508 = vsub.f32 1.0, %v507
    %v509 = vmul.f32 %v506, %v508
    %v510 = vadd.f32 %v506, %v509
    %vm511 = vweird.f32 %v502
    %vm512 = vweird.f32 %v506
    %vm513 = vmor %vm511, %vm512
    %v514 = vsel %vm513, %v506, %v510
    %v515 = vand.u32 2147483647, %v502
    %vm516 = vcmp.eq.f32.partialorder %v515, 8.507059e+37
    %v517 = vand.u32 %v502, 2147483648
    %v518 = vor.u32 1.1754944e-38, %v517
    %v519 = vsel %vm516, %v518, %v514
    %v520 = vmul.f32 %v497, %v519
    %v521 = vrcp.pop %v505
    %v522 = vmul.f32 %v505, %v521
    %v523 = vsub.f32 1.0, %v522
    %v524 = vmul.f32 %v521, %v523
    %v525 = vadd.f32 %v521, %v524
    %vm526 = vweird.f32 %v505
    %vm527 = vweird.f32 %v521
    %vm528 = vmor %vm526, %vm527
    %v529 = vsel %vm528, %v521, %v525
    %v530 = vand.u32 2147483647, %v505
    %vm531 = vcmp.eq.f32.partialorder %v530, 8.507059e+37
    %v532 = vand.u32 %v505, 2147483648
    %v533 = vor.u32 1.1754944e-38, %v532
    %v534 = vsel %vm531, %v533, %v529
    %v535 = vmul.f32 %v499, %v534
    %v536 = vpack.c.bf16 %v535, %v520
    %537 = vrot.lane.b32.xlu0 %v183, 40
    %v538 = vpop.permute.xlu0 %537
    %v541 = vsel %vm208, %v536, 0
    %543 = vmatpush.bf16.msra.mxu0 0
    %544 = vmatpush.bf16.msra.mxu0 0
    %545 = vmatpush.bf16.msra.mxu0 0
    %546 = vmatpush.bf16.msra.mxu0 0
    %547 = vmatpush.bf16.msra.mxu0 0
    %548 = vmatpush.bf16.msra.mxu0 0
    %549 = vmatpush.bf16.msra.mxu0 0
    %550 = vmatpush.bf16.msra.mxu0 %v538
    %551 = vmatmul.bf16.gmra.mxu0 %v541
    %v552 = vpop.f32.mrf.mxu0
    %v553 = vadd.f32 0.0, %v552
    %v554 = vpop.f32.mrf.mxu0
    %v555 = vadd.f32 0.0, %v554
    %556 = vdwg.mxu0
    %559 = vrot.lane.b32.xlu0 %v367, 8
    %v560 = vpop.permute.xlu0 %559
    %561 = vrot.lane.b32.xlu0 %v369, 8
    %v562 = vpop.permute.xlu0 %561
    %567 = vrot.lane.b32.xlu0 %v460, 16
    %v568 = vpop.permute.xlu0 %567
    %569 = vrot.lane.b32.xlu0 %v462, 16
    %v570 = vpop.permute.xlu0 %569
    %575 = vrot.lane.b32.xlu0 %v553, 24
    %v576 = vpop.permute.xlu0 %575
    %577 = vrot.lane.b32.xlu0 %v555, 24
    %v578 = vpop.permute.xlu0 %577
    %v581 = vsel %vm187, %v274, %v560
    %v582 = vsel %vm187, %v276, %v562
    %v583 = vsel %vm208, %v581, %v568
    %v584 = vsel %vm208, %v582, %v570
    %vm585 = vcmask 195584
    %v586 = vsel %vm585, %v583, %v576
    %v587 = vsel %vm585, %v584, %v578
    %v588 = vpack.c.bf16 %v587, %v586
    %v589 = vld [vmem:[%s4] sm:$0xf]
    %v590 = vld [vmem:[%s4 + $0x4] sm:$0xf]
    %v591 = vld [vmem:[%s4 + $0x8] sm:$0xf]
    %v592 = vld [vmem:[%s4 + $0xc] sm:$0xf]
    %v597 = vunpack.c.l.b16 %v589
    %v598 = vunpack.c.l.b16 %v590
    %v599 = vunpack.c.l.b16 %v591
    %v600 = vunpack.c.l.b16 %v592
    %v601 = vpack.c.b16 %v598, %v597
    %v602 = vpack.c.b16 %v600, %v599
    %v606 = vsel %vm83, %v588, 0
    %608 = vmatpush.bf16.msra.mxu0 0
    %609 = vmatpush.bf16.msra.mxu0 0
    %610 = vmatpush.bf16.msra.mxu0 0
    %611 = vmatpush.bf16.msra.mxu0 0
    %612 = vmatpush.bf16.msra.mxu0 0
    %613 = vmatpush.bf16.msra.mxu0 0
    %614 = vmatpush.bf16.msra.mxu0 %v602
    %615 = vmatpush.bf16.msra.mxu0 %v601
    %616 = vmatmul.bf16.gmra.mxu0 %v606
    %v617 = vpop.f32.mrf.mxu0
    %v618 = vadd.f32 0.0, %v617
    %v619 = vpop.f32.mrf.mxu0
    %v620 = vadd.f32 0.0, %v619
    %621 = vdwg.mxu0
    %v622 = vadd.f32 %v60, %v618
    %v623 = vadd.f32 %v61, %v620
    %v624 = vld [vmem:[%s5] sm:$0x1]
    %v626 = vperm.slane %v624, 0
    %v628 = vadd.f32 %v622, %v626
    %v629 = vadd.f32 %v623, %v626
    %v630 = vld [vmem:[%s12] sm:$0x1]
    %v631 = vld [vmem:[%s13] sm:$0x1]
    %v632 = vsel %vm83, %v628, 0.0
    %633 = vadd.xlane.f32.xlu0 %v632
    %v634 = vpop.xlane.xlu0 %633
    %v635 = vsel %vm83, %v629, 0.0
    %636 = vadd.xlane.f32.xlu0 %v635
    %v637 = vpop.xlane.xlu0 %636
    %v638 = vmul.f32 %v634, %v96
    %v639 = vmul.f32 %v637, %v96
    %v640 = vsub.f32 %v628, %v638
    %v641 = vsub.f32 %v629, %v639
    %v642 = vmul.f32 %v640, %v640
    %v643 = vmul.f32 %v641, %v641
    %v644 = vsel %vm83, %v642, 0.0
    %645 = vadd.xlane.f32.xlu0 %v644
    %v646 = vpop.xlane.xlu0 %645
    %v647 = vsel %vm83, %v643, 0.0
    %648 = vadd.xlane.f32.xlu0 %v647
    %v649 = vpop.xlane.xlu0 %648
    %v650 = vmul.f32 %v646, %v96
    %v651 = vmul.f32 %v649, %v96
    %v652 = vadd.f32 %v650, 1e-05
    %v653 = vadd.f32 %v651, 1e-05
    %v654 = vrsqrt.pop %v652
    %v655 = vmul.f32 %v654, %v652
    %v656 = vmul.f32 %v655, %v654
    %v657 = vmul.f32 0.5, %v656
    %v658 = vsub.f32 1.5, %v657
    %v659 = vmul.f32 %v654, %v658
    %vm660 = vweird.f32 %v652
    %vm661 = vweird.f32 %v654
    %vm662 = vmor %vm660, %vm661
    %v663 = vsel %vm662, %v654, %v659
    %v664 = vrsqrt.pop %v653
    %v665 = vmul.f32 %v664, %v653
    %v666 = vmul.f32 %v665, %v664
    %v667 = vmul.f32 0.5, %v666
    %v668 = vsub.f32 1.5, %v667
    %v669 = vmul.f32 %v664, %v668
    %vm670 = vweird.f32 %v653
    %vm671 = vweird.f32 %v664
    %vm672 = vmor %vm670, %vm671
    %v673 = vsel %vm672, %v664, %v669
    %v674 = vmul.f32 %v640, %v663
    %v675 = vmul.f32 %v641, %v673
    %v677 = vperm.slane %v630, 0
    %v679 = vmul.f32 %v674, %v677
    %v680 = vmul.f32 %v675, %v677
    %v682 = vperm.slane %v631, 0
    %v684 = vadd.f32 %v679, %v682
    %v685 = vadd.f32 %v680, %v682
    %v686 = vpack.c.bf16 %v685, %v684
    %v687 = vld [vmem:[%s8] sm:$0xf]
    %v688 = vld [vmem:[%s8 + $0x4] sm:$0xf]
    %v689 = vld [vmem:[%s8 + $0x8] sm:$0xf]
    %v690 = vld [vmem:[%s8 + $0xc] sm:$0xf]
    %v691 = vld [vmem:[%s9] sm:$0x1]
    %v693 = vperm.slane %v691, 0
    %v699 = vunpack.c.l.b16 %v687
    %v700 = vunpack.c.l.b16 %v688
    %v701 = vunpack.c.l.b16 %v689
    %v702 = vunpack.c.l.b16 %v690
    %v703 = vpack.c.b16 %v700, %v699
    %v704 = vpack.c.b16 %v702, %v701
    %v708 = vsel %vm83, %v686, 0
    %710 = vmatpush.bf16.msra.mxu0 0
    %711 = vmatpush.bf16.msra.mxu0 0
    %712 = vmatpush.bf16.msra.mxu0 0
    %713 = vmatpush.bf16.msra.mxu0 0
    %714 = vmatpush.bf16.msra.mxu0 0
    %715 = vmatpush.bf16.msra.mxu0 0
    %716 = vmatpush.bf16.msra.mxu0 %v704
    %717 = vmatpush.bf16.msra.mxu0 %v703
    %718 = vmatmul.bf16.gmra.mxu0 %v708
    %v719 = vpop.f32.mrf.mxu0
    %v720 = vadd.f32 %v693, %v719
    %v721 = vpop.f32.mrf.mxu0
    %v722 = vadd.f32 %v693, %v721
    %723 = vdwg.mxu0
    %v724 = vmul.f32 %v720, 1.702
    %v725 = vmul.f32 %v722, 1.702
    %v726 = vxor.u32 %v724, 2147483648
    %v727 = vxor.u32 %v725, 2147483648
    %v728 = vmul.f32 %v726, 1.442695
    %v729 = vpow.pop %v728
    %v730 = vmul.f32 %v727, 1.442695
    %v731 = vpow.pop %v730
    %v732 = vadd.f32 %v729, 1.0
    %v733 = vadd.f32 %v731, 1.0
    %v734 = vrcp.pop %v732
    %v735 = vmul.f32 %v732, %v734
    %v736 = vsub.f32 1.0, %v735
    %v737 = vmul.f32 %v734, %v736
    %v738 = vadd.f32 %v734, %v737
    %vm739 = vweird.f32 %v732
    %vm740 = vweird.f32 %v734
    %vm741 = vmor %vm739, %vm740
    %v742 = vsel %vm741, %v734, %v738
    %v743 = vand.u32 2147483647, %v732
    %vm744 = vcmp.eq.f32.partialorder %v743, 8.507059e+37
    %v745 = vand.u32 %v732, 2147483648
    %v746 = vor.u32 1.1754944e-38, %v745
    %v747 = vsel %vm744, %v746, %v742
    %v748 = vmul.f32 1.0, %v747
    %v749 = vrcp.pop %v733
    %v750 = vmul.f32 %v733, %v749
    %v751 = vsub.f32 1.0, %v750
    %v752 = vmul.f32 %v749, %v751
    %v753 = vadd.f32 %v749, %v752
    %vm754 = vweird.f32 %v733
    %vm755 = vweird.f32 %v749
    %vm756 = vmor %vm754, %vm755
    %v757 = vsel %vm756, %v749, %v753
    %v758 = vand.u32 2147483647, %v733
    %vm759 = vcmp.eq.f32.partialorder %v758, 8.507059e+37
    %v760 = vand.u32 %v733, 2147483648
    %v761 = vor.u32 1.1754944e-38, %v760
    %v762 = vsel %vm759, %v761, %v757
    %v763 = vmul.f32 1.0, %v762
    %v764 = vmul.f32 %v720, %v748
    %v765 = vmul.f32 %v722, %v763
    %v766 = vpack.c.bf16 %v765, %v764
    %v767 = vld [vmem:[%s10] sm:$0xf]
    %v768 = vld [vmem:[%s10 + $0x4] sm:$0xf]
    %v769 = vld [vmem:[%s10 + $0x8] sm:$0xf]
    %v770 = vld [vmem:[%s10 + $0xc] sm:$0xf]
    %v771 = vld [vmem:[%s10 + $0x10] sm:$0xf]
    %v772 = vld [vmem:[%s10 + $0x14] sm:$0xf]
    %v773 = vld [vmem:[%s10 + $0x18] sm:$0xf]
    %v774 = vld [vmem:[%s10 + $0x1c] sm:$0xf]
    %v775 = vld [vmem:[%s10 + $0x20] sm:$0xf]
    %v776 = vld [vmem:[%s10 + $0x24] sm:$0xf]
    %v777 = vld [vmem:[%s10 + $0x28] sm:$0xf]
    %v778 = vld [vmem:[%s10 + $0x2c] sm:$0xf]
    %v779 = vld [vmem:[%s10 + $0x30] sm:$0xf]
    %v780 = vld [vmem:[%s10 + $0x34] sm:$0xf]
    %v781 = vld [vmem:[%s10 + $0x38] sm:$0xf]
    %v782 = vld [vmem:[%s10 + $0x3c] sm:$0xf]
    %v799 = vunpack.c.l.b16 %v767
    %v800 = vunpack.c.l.b16 %v768
    %v801 = vunpack.c.l.b16 %v769
    %v802 = vunpack.c.l.b16 %v770
    %v803 = vunpack.c.l.b16 %v771
    %v804 = vunpack.c.l.b16 %v772
    %v805 = vunpack.c.l.b16 %v773
    %v806 = vunpack.c.l.b16 %v774
    %v807 = vunpack.c.l.b16 %v775
    %v808 = vunpack.c.l.b16 %v776
    %v809 = vunpack.c.l.b16 %v777
    %v810 = vunpack.c.l.b16 %v778
    %v811 = vunpack.c.l.b16 %v779
    %v812 = vunpack.c.l.b16 %v780
    %v813 = vunpack.c.l.b16 %v781
    %v814 = vunpack.c.l.b16 %v782
    %v815 = vpack.c.b16 %v800, %v799
    %v816 = vpack.c.b16 %v802, %v801
    %v817 = vpack.c.b16 %v804, %v803
    %v818 = vpack.c.b16 %v806, %v805
    %v819 = vpack.c.b16 %v808, %v807
    %v820 = vpack.c.b16 %v810, %v809
    %v821 = vpack.c.b16 %v812, %v811
    %v822 = vpack.c.b16 %v814, %v813
    %831 = vmatpush.bf16.msra.mxu0 %v822
    %832 = vmatpush.bf16.msra.mxu0 %v821
    %833 = vmatpush.bf16.msra.mxu0 %v820
    %834 = vmatpush.bf16.msra.mxu0 %v819
    %835 = vmatpush.bf16.msra.mxu0 %v818
    %836 = vmatpush.bf16.msra.mxu0 %v817
    %837 = vmatpush.bf16.msra.mxu0 %v816
    %838 = vmatpush.bf16.msra.mxu0 %v815
    %839 = vmatmul.bf16.gmra.mxu0 %v766
    %v840 = vpop.f32.mrf.mxu0
    %v841 = vadd.f32 0.0, %v840
    %v842 = vpop.f32.mrf.mxu0
    %v843 = vadd.f32 0.0, %v842
    %844 = vdwg.mxu0
    %v845 = vadd.f32 %v628, %v841
    %v846 = vadd.f32 %v629, %v843
    %v847 = vld [vmem:[%s11] sm:$0x1]
    %v849 = vperm.slane %v847, 0
    %v851 = vadd.f32 %v845, %v849
    %v852 = vadd.f32 %v846, %v849
    %s853 = scalar_lea.vmem %s6, 1
    %v854 = vld [vmem:[%s853] sm:$0x1]
    %s855 = scalar_lea.vmem %s7, 1
    %v856 = vld [vmem:[%s855] sm:$0x1]
    %v857 = vsel %vm83, %v851, 0.0
    %858 = vadd.xlane.f32.xlu0 %v857
    %v859 = vpop.xlane.xlu0 %858
    %v860 = vsel %vm83, %v852, 0.0
    %861 = vadd.xlane.f32.xlu0 %v860
    %v862 = vpop.xlane.xlu0 %861
    %v863 = vmul.f32 %v859, %v96
    %v864 = vmul.f32 %v862, %v96
    %v865 = vsub.f32 %v851, %v863
    %v866 = vsub.f32 %v852, %v864
    %v867 = vmul.f32 %v865, %v865
    %v868 = vmul.f32 %v866, %v866
    %v869 = vsel %vm83, %v867, 0.0
    %870 = vadd.xlane.f32.xlu0 %v869
    %v871 = vpop.xlane.xlu0 %870
    %v872 = vsel %vm83, %v868, 0.0
    %873 = vadd.xlane.f32.xlu0 %v872
    %v874 = vpop.xlane.xlu0 %873
    %v875 = vmul.f32 %v871, %v96
    %v876 = vmul.f32 %v874, %v96
    %v877 = vadd.f32 %v875, 1e-05
    %v878 = vadd.f32 %v876, 1e-05
    %v879 = vrsqrt.pop %v877
    %v880 = vmul.f32 %v879, %v877
    %v881 = vmul.f32 %v880, %v879
    %v882 = vmul.f32 0.5, %v881
    %v883 = vsub.f32 1.5, %v882
    %v884 = vmul.f32 %v879, %v883
    %vm885 = vweird.f32 %v877
    %vm886 = vweird.f32 %v879
    %vm887 = vmor %vm885, %vm886
    %v888 = vsel %vm887, %v879, %v884
    %v889 = vrsqrt.pop %v878
    %v890 = vmul.f32 %v889, %v878
    %v891 = vmul.f32 %v890, %v889
    %v892 = vmul.f32 0.5, %v891
    %v893 = vsub.f32 1.5, %v892
    %v894 = vmul.f32 %v889, %v893
    %vm895 = vweird.f32 %v878
    %vm896 = vweird.f32 %v889
    %vm897 = vmor %vm895, %vm896
    %v898 = vsel %vm897, %v889, %v894
    %v899 = vmul.f32 %v865, %v888
    %v900 = vmul.f32 %v866, %v898
    %v902 = vperm.slane %v854, 0
    %v904 = vmul.f32 %v899, %v902
    %v905 = vmul.f32 %v900, %v902
    %v907 = vperm.slane %v856, 0
    %v909 = vadd.f32 %v904, %v907
    %v910 = vadd.f32 %v905, %v907
    %v911 = vpack.c.bf16 %v910, %v909
    %s912 = scalar_lea.vmem %s2, 16
    %v913 = vld [vmem:[%s912] sm:$0xf]
    %v914 = vld [vmem:[%s912 + $0x4] sm:$0xf]
    %v915 = vld [vmem:[%s912 + $0x8] sm:$0xf]
    %v916 = vld [vmem:[%s912 + $0xc] sm:$0xf]
    %s917 = scalar_lea.vmem %s3, 1
    %v918 = vld [vmem:[%s917] sm:$0x1]
    %v920 = vperm.slane %v918, 0
    %v926 = vunpack.c.l.b16 %v913
    %v927 = vunpack.c.l.b16 %v914
    %v928 = vunpack.c.l.b16 %v915
    %v929 = vunpack.c.l.b16 %v916
    %v930 = vpack.c.b16 %v927, %v926
    %v931 = vpack.c.b16 %v929, %v928
    %v935 = vsel %vm83, %v911, 0
    %937 = vmatpush.bf16.msra.mxu0 0
    %938 = vmatpush.bf16.msra.mxu0 0
    %939 = vmatpush.bf16.msra.mxu0 0
    %940 = vmatpush.bf16.msra.mxu0 0
    %941 = vmatpush.bf16.msra.mxu0 0
    %942 = vmatpush.bf16.msra.mxu0 0
    %943 = vmatpush.bf16.msra.mxu0 %v931
    %944 = vmatpush.bf16.msra.mxu0 %v930
    %945 = vmatmul.bf16.gmra.mxu0 %v935
    %v946 = vpop.f32.mrf.mxu0
    %v947 = vadd.f32 %v920, %v946
    %v948 = vpop.f32.mrf.mxu0
    %v949 = vadd.f32 %v920, %v948
    %950 = vdwg.mxu0
    %v951 = vpack.c.bf16 %v949, %v947
    %953 = vrot.lane.b32.xlu0 %v951, 96
    %v954 = vpop.permute.xlu0 %953
    %v956 = vsel %vm187, %v951, 0
    %v959 = vsel %vm187, %v954, 0
    %961 = vmatpush.bf16.xpose.msra.mxu0 0
    %962 = vmatpush.bf16.xpose.msra.mxu0 0
    %963 = vmatpush.bf16.xpose.msra.mxu0 0
    %964 = vmatpush.bf16.xpose.msra.mxu0 0
    %965 = vmatpush.bf16.xpose.msra.mxu0 0
    %966 = vmatpush.bf16.xpose.msra.mxu0 0
    %967 = vmatpush.bf16.xpose.msra.mxu0 0
    %968 = vmatpush.bf16.xpose.msra.mxu0 %v959
    %969 = vmatmul.bf16.gmra.mxu0 %v956
    %v970 = vpop.f32.mrf.mxu0
    %v971 = vadd.f32 %v79, %v970
    %v972 = vpop.f32.mrf.mxu0
    %v973 = vadd.f32 %v80, %v972
    %974 = vdwg.mxu0
    %v975 = vsel %vm208, %v971, -inf
    %976 = vmax.xlane.f32.xlu0 %v975
    %v977 = vpop.xlane.xlu0 %976
    %v978 = vsel %vm208, %v973, -inf
    %979 = vmax.xlane.f32.xlu0 %v978
    %v980 = vpop.xlane.xlu0 %979
    %v981 = vsub.f32 %v971, %v977
    %v982 = vsub.f32 %v973, %v980
    %v983 = vmul.f32 %v981, 1.442695
    %v984 = vpow.pop %v983
    %v985 = vmul.f32 %v982, 1.442695
    %v986 = vpow.pop %v985
    %v987 = vsel %vm208, %v984, 0.0
    %988 = vadd.xlane.f32.xlu0 %v987
    %v989 = vpop.xlane.xlu0 %988
    %v990 = vsel %vm208, %v986, 0.0
    %991 = vadd.xlane.f32.xlu0 %v990
    %v992 = vpop.xlane.xlu0 %991
    %v993 = vrcp.pop %v989
    %v994 = vmul.f32 %v989, %v993
    %v995 = vsub.f32 1.0, %v994
    %v996 = vmul.f32 %v993, %v995
    %v997 = vadd.f32 %v993, %v996
    %vm998 = vweird.f32 %v989
    %vm999 = vweird.f32 %v993
    %vm1000 = vmor %vm998, %vm999
    %v1001 = vsel %vm1000, %v993, %v997
    %v1002 = vand.u32 2147483647, %v989
    %vm1003 = vcmp.eq.f32.partialorder %v1002, 8.507059e+37
    %v1004 = vand.u32 %v989, 2147483648
    %v1005 = vor.u32 1.1754944e-38, %v1004
    %v1006 = vsel %vm1003, %v1005, %v1001
    %v1007 = vmul.f32 %v984, %v1006
    %v1008 = vrcp.pop %v992
    %v1009 = vmul.f32 %v992, %v1008
    %v1010 = vsub.f32 1.0, %v1009
    %v1011 = vmul.f32 %v1008, %v1010
    %v1012 = vadd.f32 %v1008, %v1011
    %vm1013 = vweird.f32 %v992
    %vm1014 = vweird.f32 %v1008
    %vm1015 = vmor %vm1013, %vm1014
    %v1016 = vsel %vm1015, %v1008, %v1012
    %v1017 = vand.u32 2147483647, %v992
    %vm1018 = vcmp.eq.f32.partialorder %v1017, 8.507059e+37
    %v1019 = vand.u32 %v992, 2147483648
    %v1020 = vor.u32 1.1754944e-38, %v1019
    %v1021 = vsel %vm1018, %v1020, %v1016
    %v1022 = vmul.f32 %v986, %v1021
    %v1023 = vpack.c.bf16 %v1022, %v1007
    %1024 = vrot.lane.b32.xlu0 %v951, 64
    %v1025 = vpop.permute.xlu0 %1024
    %v1028 = vsel %vm208, %v1023, 0
    %1030 = vmatpush.bf16.msra.mxu0 0
    %1031 = vmatpush.bf16.msra.mxu0 0
    %1032 = vmatpush.bf16.msra.mxu0 0
    %1033 = vmatpush.bf16.msra.mxu0 0
    %1034 = vmatpush.bf16.msra.mxu0 0
    %1035 = vmatpush.bf16.msra.mxu0 0
    %1036 = vmatpush.bf16.msra.mxu0 0
    %1037 = vmatpush.bf16.msra.mxu0 %v1025
    %1038 = vmatmul.bf16.gmra.mxu0 %v1028
    %v1039 = vpop.f32.mrf.mxu0
    %v1040 = vadd.f32 0.0, %v1039
    %v1041 = vpop.f32.mrf.mxu0
    %v1042 = vadd.f32 0.0, %v1041
    %1043 = vdwg.mxu0
    %1044 = vrot.lane.b32.xlu0 %v951, 120
    %v1045 = vpop.permute.xlu0 %1044
    %1046 = vrot.lane.b32.xlu0 %v951, 88
    %v1047 = vpop.permute.xlu0 %1046
    %v1049 = vsel %vm187, %v1045, 0
    %v1052 = vsel %vm187, %v1047, 0
    %1054 = vmatpush.bf16.xpose.msra.mxu0 0
    %1055 = vmatpush.bf16.xpose.msra.mxu0 0
    %1056 = vmatpush.bf16.xpose.msra.mxu0 0
    %1057 = vmatpush.bf16.xpose.msra.mxu0 0
    %1058 = vmatpush.bf16.xpose.msra.mxu0 0
    %1059 = vmatpush.bf16.xpose.msra.mxu0 0
    %1060 = vmatpush.bf16.xpose.msra.mxu0 0
    %1061 = vmatpush.bf16.xpose.msra.mxu0 %v1052
    %1062 = vmatmul.bf16.gmra.mxu0 %v1049
    %v1063 = vpop.f32.mrf.mxu0
    %v1064 = vadd.f32 %v79, %v1063
    %v1065 = vpop.f32.mrf.mxu0
    %v1066 = vadd.f32 %v80, %v1065
    %1067 = vdwg.mxu0
    %v1068 = vsel %vm208, %v1064, -inf
    %1069 = vmax.xlane.f32.xlu0 %v1068
    %v1070 = vpop.xlane.xlu0 %1069
    %v1071 = vsel %vm208, %v1066, -inf
    %1072 = vmax.xlane.f32.xlu0 %v1071
    %v1073 = vpop.xlane.xlu0 %1072
    %v1074 = vsub.f32 %v1064, %v1070
    %v1075 = vsub.f32 %v1066, %v1073
    %v1076 = vmul.f32 %v1074, 1.442695
    %v1077 = vpow.pop %v1076
    %v1078 = vmul.f32 %v1075, 1.442695
    %v1079 = vpow.pop %v1078
    %v1080 = vsel %vm208, %v1077, 0.0
    %1081 = vadd.xlane.f32.xlu0 %v1080
    %v1082 = vpop.xlane.xlu0 %1081
    %v1083 = vsel %vm208, %v1079, 0.0
    %1084 = vadd.xlane.f32.xlu0 %v1083
    %v1085 = vpop.xlane.xlu0 %1084
    %v1086 = vrcp.pop %v1082
    %v1087 = vmul.f32 %v1082, %v1086
    %v1088 = vsub.f32 1.0, %v1087
    %v1089 = vmul.f32 %v1086, %v1088
    %v1090 = vadd.f32 %v1086, %v1089
    %vm1091 = vweird.f32 %v1082
    %vm1092 = vweird.f32 %v1086
    %vm1093 = vmor %vm1091, %vm1092
    %v1094 = vsel %vm1093, %v1086, %v1090
    %v1095 = vand.u32 2147483647, %v1082
    %vm1096 = vcmp.eq.f32.partialorder %v1095, 8.507059e+37
    %v1097 = vand.u32 %v1082, 2147483648
    %v1098 = vor.u32 1.1754944e-38, %v1097
    %v1099 = vsel %vm1096, %v1098, %v1094
    %v1100 = vmul.f32 %v1077, %v1099
    %v1101 = vrcp.pop %v1085
    %v1102 = vmul.f32 %v1085, %v1101
    %v1103 = vsub.f32 1.0, %v1102
    %v1104 = vmul.f32 %v1101, %v1103
    %v1105 = vadd.f32 %v1101, %v1104
    %vm1106 = vweird.f32 %v1085
    %vm1107 = vweird.f32 %v1101
    %vm1108 = vmor %vm1106, %vm1107
    %v1109 = vsel %vm1108, %v1101, %v1105
    %v1110 = vand.u32 2147483647, %v1085
    %vm1111 = vcmp.eq.f32.partialorder %v1110, 8.507059e+37
    %v1112 = vand.u32 %v1085, 2147483648
    %v1113 = vor.u32 1.1754944e-38, %v1112
    %v1114 = vsel %vm1111, %v1113, %v1109
    %v1115 = vmul.f32 %v1079, %v1114
    %v1116 = vpack.c.bf16 %v1115, %v1100
    %1117 = vrot.lane.b32.xlu0 %v951, 56
    %v1118 = vpop.permute.xlu0 %1117
    %v1121 = vsel %vm208, %v1116, 0
    %1123 = vmatpush.bf16.msra.mxu0 0
    %1124 = vmatpush.bf16.msra.mxu0 0
    %1125 = vmatpush.bf16.msra.mxu0 0
    %1126 = vmatpush.bf16.msra.mxu0 0
    %1127 = vmatpush.bf16.msra.mxu0 0
    %1128 = vmatpush.bf16.msra.mxu0 0
    %1129 = vmatpush.bf16.msra.mxu0 0
    %1130 = vmatpush.bf16.msra.mxu0 %v1118
    %1131 = vmatmul.bf16.gmra.mxu0 %v1121
    %v1132 = vpop.f32.mrf.mxu0
    %v1133 = vadd.f32 0.0, %v1132
    %v1134 = vpop.f32.mrf.mxu0
    %v1135 = vadd.f32 0.0, %v1134
    %1136 = vdwg.mxu0
    %1137 = vrot.lane.b32.xlu0 %v951, 112
    %v1138 = vpop.permute.xlu0 %1137
    %1139 = vrot.lane.b32.xlu0 %v951, 80
    %v1140 = vpop.permute.xlu0 %1139
    %v1142 = vsel %vm187, %v1138, 0
    %v1145 = vsel %vm187, %v1140, 0
    %1147 = vmatpush.bf16.xpose.msra.mxu0 0
    %1148 = vmatpush.bf16.xpose.msra.mxu0 0
    %1149 = vmatpush.bf16.xpose.msra.mxu0 0
    %1150 = vmatpush.bf16.xpose.msra.mxu0 0
    %1151 = vmatpush.bf16.xpose.msra.mxu0 0
    %1152 = vmatpush.bf16.xpose.msra.mxu0 0
    %1153 = vmatpush.bf16.xpose.msra.mxu0 0
    %1154 = vmatpush.bf16.xpose.msra.mxu0 %v1145
    %1155 = vmatmul.bf16.gmra.mxu0 %v1142
    %v1156 = vpop.f32.mrf.mxu0
    %v1157 = vadd.f32 %v79, %v1156
    %v1158 = vpop.f32.mrf.mxu0
    %v1159 = vadd.f32 %v80, %v1158
    %1160 = vdwg.mxu0
    %v1161 = vsel %vm208, %v1157, -inf
    %1162 = vmax.xlane.f32.xlu0 %v1161
    %v1163 = vpop.xlane.xlu0 %1162
    %v1164 = vsel %vm208, %v1159, -inf
    %1165 = vmax.xlane.f32.xlu0 %v1164
    %v1166 = vpop.xlane.xlu0 %1165
    %v1167 = vsub.f32 %v1157, %v1163
    %v1168 = vsub.f32 %v1159, %v1166
    %v1169 = vmul.f32 %v1167, 1.442695
    %v1170 = vpow.pop %v1169
    %v1171 = vmul.f32 %v1168, 1.442695
    %v1172 = vpow.pop %v1171
    %v1173 = vsel %vm208, %v1170, 0.0
    %1174 = vadd.xlane.f32.xlu0 %v1173
    %v1175 = vpop.xlane.xlu0 %1174
    %v1176 = vsel %vm208, %v1172, 0.0
    %1177 = vadd.xlane.f32.xlu0 %v1176
    %v1178 = vpop.xlane.xlu0 %1177
    %v1179 = vrcp.pop %v1175
    %v1180 = vmul.f32 %v1175, %v1179
    %v1181 = vsub.f32 1.0, %v1180
    %v1182 = vmul.f32 %v1179, %v1181
    %v1183 = vadd.f32 %v1179, %v1182
    %vm1184 = vweird.f32 %v1175
    %vm1185 = vweird.f32 %v1179
    %vm1186 = vmor %vm1184, %vm1185
    %v1187 = vsel %vm1186, %v1179, %v1183
    %v1188 = vand.u32 2147483647, %v1175
    %vm1189 = vcmp.eq.f32.partialorder %v1188, 8.507059e+37
    %v1190 = vand.u32 %v1175, 2147483648
    %v1191 = vor.u32 1.1754944e-38, %v1190
    %v1192 = vsel %vm1189, %v1191, %v1187
    %v1193 = vmul.f32 %v1170, %v1192
    %v1194 = vrcp.pop %v1178
    %v1195 = vmul.f32 %v1178, %v1194
    %v1196 = vsub.f32 1.0, %v1195
    %v1197 = vmul.f32 %v1194, %v1196
    %v1198 = vadd.f32 %v1194, %v1197
    %vm1199 = vweird.f32 %v1178
    %vm1200 = vweird.f32 %v1194
    %vm1201 = vmor %vm1199, %vm1200
    %v1202 = vsel %vm1201, %v1194, %v1198
    %v1203 = vand.u32 2147483647, %v1178
    %vm1204 = vcmp.eq.f32.partialorder %v1203, 8.507059e+37
    %v1205 = vand.u32 %v1178, 2147483648
    %v1206 = vor.u32 1.1754944e-38, %v1205
    %v1207 = vsel %vm1204, %v1206, %v1202
    %v1208 = vmul.f32 %v1172, %v1207
    %v1209 = vpack.c.bf16 %v1208, %v1193
    %1210 = vrot.lane.b32.xlu0 %v951, 48
    %v1211 = vpop.permute.xlu0 %1210
    %v1214 = vsel %vm208, %v1209, 0
    %1216 = vmatpush.bf16.msra.mxu0 0
    %1217 = vmatpush.bf16.msra.mxu0 0
    %1218 = vmatpush.bf16.msra.mxu0 0
    %1219 = vmatpush.bf16.msra.mxu0 0
    %1220 = vmatpush.bf16.msra.mxu0 0
    %1221 = vmatpush.bf16.msra.mxu0 0
    %1222 = vmatpush.bf16.msra.mxu0 0
    %1223 = vmatpush.bf16.msra.mxu0 %v1211
    %1224 = vmatmul.bf16.gmra.mxu0 %v1214
    %v1225 = vpop.f32.mrf.mxu0
    %v1226 = vadd.f32 0.0, %v1225
    %v1227 = vpop.f32.mrf.mxu0
    %v1228 = vadd.f32 0.0, %v1227
    %1229 = vdwg.mxu0
    %1230 = vrot.lane.b32.xlu0 %v951, 104
    %v1231 = vpop.permute.xlu0 %1230
    %1232 = vrot.lane.b32.xlu0 %v951, 72
    %v1233 = vpop.permute.xlu0 %1232
    %v1235 = vsel %vm187, %v1231, 0
    %v1238 = vsel %vm187, %v1233, 0
    %1240 = vmatpush.bf16.xpose.msra.mxu0 0
    %1241 = vmatpush.bf16.xpose.msra.mxu0 0
    %1242 = vmatpush.bf16.xpose.msra.mxu0 0
    %1243 = vmatpush.bf16.xpose.msra.mxu0 0
    %1244 = vmatpush.bf16.xpose.msra.mxu0 0
    %1245 = vmatpush.bf16.xpose.msra.mxu0 0
    %1246 = vmatpush.bf16.xpose.msra.mxu0 0
    %1247 = vmatpush.bf16.xpose.msra.mxu0 %v1238
    %1248 = vmatmul.bf16.gmra.mxu0 %v1235
    %v1249 = vpop.f32.mrf.mxu0
    %v1250 = vadd.f32 %v79, %v1249
    %v1251 = vpop.f32.mrf.mxu0
    %v1252 = vadd.f32 %v80, %v1251
    %1253 = vdwg.mxu0
    %v1254 = vsel %vm208, %v1250, -inf
    %1255 = vmax.xlane.f32.xlu0 %v1254
    %v1256 = vpop.xlane.xlu0 %1255
    %v1257 = vsel %vm208, %v1252, -inf
    %1258 = vmax.xlane.f32.xlu0 %v1257
    %v1259 = vpop.xlane.xlu0 %1258
    %v1260 = vsub.f32 %v1250, %v1256
    %v1261 = vsub.f32 %v1252, %v1259
    %v1262 = vmul.f32 %v1260, 1.442695
    %v1263 = vpow.pop %v1262
    %v1264 = vmul.f32 %v1261, 1.442695
    %v1265 = vpow.pop %v1264
    %v1266 = vsel %vm208, %v1263, 0.0
    %1267 = vadd.xlane.f32.xlu0 %v1266
    %v1268 = vpop.xlane.xlu0 %1267
    %v1269 = vsel %vm208, %v1265, 0.0
    %1270 = vadd.xlane.f32.xlu0 %v1269
    %v1271 = vpop.xlane.xlu0 %1270
    %v1272 = vrcp.pop %v1268
    %v1273 = vmul.f32 %v1268, %v1272
    %v1274 = vsub.f32 1.0, %v1273
    %v1275 = vmul.f32 %v1272, %v1274
    %v1276 = vadd.f32 %v1272, %v1275
    %vm1277 = vweird.f32 %v1268
    %vm1278 = vweird.f32 %v1272
    %vm1279 = vmor %vm1277, %vm1278
    %v1280 = vsel %vm1279, %v1272, %v1276
    %v1281 = vand.u32 2147483647, %v1268
    %vm1282 = vcmp.eq.f32.partialorder %v1281, 8.507059e+37
    %v1283 = vand.u32 %v1268, 2147483648
    %v1284 = vor.u32 1.1754944e-38, %v1283
    %v1285 = vsel %vm1282, %v1284, %v1280
    %v1286 = vmul.f32 %v1263, %v1285
    %v1287 = vrcp.pop %v1271
    %v1288 = vmul.f32 %v1271, %v1287
    %v1289 = vsub.f32 1.0, %v1288
    %v1290 = vmul.f32 %v1287, %v1289
    %v1291 = vadd.f32 %v1287, %v1290
    %vm1292 = vweird.f32 %v1271
    %vm1293 = vweird.f32 %v1287
    %vm1294 = vmor %vm1292, %vm1293
    %v1295 = vsel %vm1294, %v1287, %v1291
    %v1296 = vand.u32 2147483647, %v1271
    %vm1297 = vcmp.eq.f32.partialorder %v1296, 8.507059e+37
    %v1298 = vand.u32 %v1271, 2147483648
    %v1299 = vor.u32 1.1754944e-38, %v1298
    %v1300 = vsel %vm1297, %v1299, %v1295
    %v1301 = vmul.f32 %v1265, %v1300
    %v1302 = vpack.c.bf16 %v1301, %v1286
    %1303 = vrot.lane.b32.xlu0 %v951, 40
    %v1304 = vpop.permute.xlu0 %1303
    %v1307 = vsel %vm208, %v1302, 0
    %1309 = vmatpush.bf16.msra.mxu0 0
    %1310 = vmatpush.bf16.msra.mxu0 0
    %1311 = vmatpush.bf16.msra.mxu0 0
    %1312 = vmatpush.bf16.msra.mxu0 0
    %1313 = vmatpush.bf16.msra.mxu0 0
    %1314 = vmatpush.bf16.msra.mxu0 0
    %1315 = vmatpush.bf16.msra.mxu0 0
    %1316 = vmatpush.bf16.msra.mxu0 %v1304
    %1317 = vmatmul.bf16.gmra.mxu0 %v1307
    %v1318 = vpop.f32.mrf.mxu0
    %v1319 = vadd.f32 0.0, %v1318
    %v1320 = vpop.f32.mrf.mxu0
    %v1321 = vadd.f32 0.0, %v1320
    %1322 = vdwg.mxu0
    %1325 = vrot.lane.b32.xlu0 %v1133, 8
    %v1326 = vpop.permute.xlu0 %1325
    %1327 = vrot.lane.b32.xlu0 %v1135, 8
    %v1328 = vpop.permute.xlu0 %1327
    %1333 = vrot.lane.b32.xlu0 %v1226, 16
    %v1334 = vpop.permute.xlu0 %1333
    %1335 = vrot.lane.b32.xlu0 %v1228, 16
    %v1336 = vpop.permute.xlu0 %1335
    %1341 = vrot.lane.b32.xlu0 %v1319, 24
    %v1342 = vpop.permute.xlu0 %1341
    %1343 = vrot.lane.b32.xlu0 %v1321, 24
    %v1344 = vpop.permute.xlu0 %1343
    %v1347 = vsel %vm187, %v1040, %v1326
    %v1348 = vsel %vm187, %v1042, %v1328
    %v1349 = vsel %vm208, %v1347, %v1334
    %v1350 = vsel %vm208, %v1348, %v1336
    %v1351 = vsel %vm585, %v1349, %v1342
    %v1352 = vsel %vm585, %v1350, %v1344
    %v1353 = vpack.c.bf16 %v1352, %v1351
    %s1354 = scalar_lea.vmem %s4, 16
    %v1355 = vld [vmem:[%s1354] sm:$0xf]
    %v1356 = vld [vmem:[%s1354 + $0x4] sm:$0xf]
    %v1357 = vld [vmem:[%s1354 + $0x8] sm:$0xf]
    %v1358 = vld [vmem:[%s1354 + $0xc] sm:$0xf]
    %v1363 = vunpack.c.l.b16 %v1355
    %v1364 = vunpack.c.l.b16 %v1356
    %v1365 = vunpack.c.l.b16 %v1357
    %v1366 = vunpack.c.l.b16 %v1358
    %v1367 = vpack.c.b16 %v1364, %v1363
    %v1368 = vpack.c.b16 %v1366, %v1365
    %v1372 = vsel %vm83, %v1353, 0
    %1374 = vmatpush.bf16.msra.mxu0 0
    %1375 = vmatpush.bf16.msra.mxu0 0
    %1376 = vmatpush.bf16.msra.mxu0 0
    %1377 = vmatpush.bf16.msra.mxu0 0
    %1378 = vmatpush.bf16.msra.mxu0 0
    %1379 = vmatpush.bf16.msra.mxu0 0
    %1380 = vmatpush.bf16.msra.mxu0 %v1368
    %1381 = vmatpush.bf16.msra.mxu0 %v1367
    %1382 = vmatmul.bf16.gmra.mxu0 %v1372
    %v1383 = vpop.f32.mrf.mxu0
    %v1384 = vadd.f32 0.0, %v1383
    %v1385 = vpop.f32.mrf.mxu0
    %v1386 = vadd.f32 0.0, %v1385
    %1387 = vdwg.mxu0
    %v1388 = vadd.f32 %v851, %v1384
    %v1389 = vadd.f32 %v852, %v1386
    %s1390 = scalar_lea.vmem %s5, 1
    %v1391 = vld [vmem:[%s1390] sm:$0x1]
    %v1393 = vperm.slane %v1391, 0
    %v1395 = vadd.f32 %v1388, %v1393
    %v1396 = vadd.f32 %v1389, %v1393
    %s1397 = scalar_lea.vmem %s12, 1
    %v1398 = vld [vmem:[%s1397] sm:$0x1]
    %s1399 = scalar_lea.vmem %s13, 1
    %v1400 = vld [vmem:[%s1399] sm:$0x1]
    %v1401 = vsel %vm83, %v1395, 0.0
    %1402 = vadd.xlane.f32.xlu0 %v1401
    %v1403 = vpop.xlane.xlu0 %1402
    %v1404 = vsel %vm83, %v1396, 0.0
    %1405 = vadd.xlane.f32.xlu0 %v1404
    %v1406 = vpop.xlane.xlu0 %1405
    %v1407 = vmul.f32 %v1403, %v96
    %v1408 = vmul.f32 %v1406, %v96
    %v1409 = vsub.f32 %v1395, %v1407
    %v1410 = vsub.f32 %v1396, %v1408
    %v1411 = vmul.f32 %v1409, %v1409
    %v1412 = vmul.f32 %v1410, %v1410
    %v1413 = vsel %vm83, %v1411, 0.0
    %1414 = vadd.xlane.f32.xlu0 %v1413
    %v1415 = vpop.xlane.xlu0 %1414
    %v1416 = vsel %vm83, %v1412, 0.0
    %1417 = vadd.xlane.f32.xlu0 %v1416
    %v1418 = vpop.xlane.xlu0 %1417
    %v1419 = vmul.f32 %v1415, %v96
    %v1420 = vmul.f32 %v1418, %v96
    %v1421 = vadd.f32 %v1419, 1e-05
    %v1422 = vadd.f32 %v1420, 1e-05
    %v1423 = vrsqrt.pop %v1421
    %v1424 = vmul.f32 %v1423, %v1421
    %v1425 = vmul.f32 %v1424, %v1423
    %v1426 = vmul.f32 0.5, %v1425
    %v1427 = vsub.f32 1.5, %v1426
    %v1428 = vmul.f32 %v1423, %v1427
    %vm1429 = vweird.f32 %v1421
    %vm1430 = vweird.f32 %v1423
    %vm1431 = vmor %vm1429, %vm1430
    %v1432 = vsel %vm1431, %v1423, %v1428
    %v1433 = vrsqrt.pop %v1422
    %v1434 = vmul.f32 %v1433, %v1422
    %v1435 = vmul.f32 %v1434, %v1433
    %v1436 = vmul.f32 0.5, %v1435
    %v1437 = vsub.f32 1.5, %v1436
    %v1438 = vmul.f32 %v1433, %v1437
    %vm1439 = vweird.f32 %v1422
    %vm1440 = vweird.f32 %v1433
    %vm1441 = vmor %vm1439, %vm1440
    %v1442 = vsel %vm1441, %v1433, %v1438
    %v1443 = vmul.f32 %v1409, %v1432
    %v1444 = vmul.f32 %v1410, %v1442
    %v1446 = vperm.slane %v1398, 0
    %v1448 = vmul.f32 %v1443, %v1446
    %v1449 = vmul.f32 %v1444, %v1446
    %v1451 = vperm.slane %v1400, 0
    %v1453 = vadd.f32 %v1448, %v1451
    %v1454 = vadd.f32 %v1449, %v1451
    %v1455 = vpack.c.bf16 %v1454, %v1453
    %s1456 = scalar_lea.vmem %s8, 16
    %v1457 = vld [vmem:[%s1456] sm:$0xf]
    %v1458 = vld [vmem:[%s1456 + $0x4] sm:$0xf]
    %v1459 = vld [vmem:[%s1456 + $0x8] sm:$0xf]
    %v1460 = vld [vmem:[%s1456 + $0xc] sm:$0xf]
    %s1461 = scalar_lea.vmem %s9, 1
    %v1462 = vld [vmem:[%s1461] sm:$0x1]
    %v1464 = vperm.slane %v1462, 0
    %v1470 = vunpack.c.l.b16 %v1457
    %v1471 = vunpack.c.l.b16 %v1458
    %v1472 = vunpack.c.l.b16 %v1459
    %v1473 = vunpack.c.l.b16 %v1460
    %v1474 = vpack.c.b16 %v1471, %v1470
    %v1475 = vpack.c.b16 %v1473, %v1472
    %v1479 = vsel %vm83, %v1455, 0
    %1481 = vmatpush.bf16.msra.mxu0 0
    %1482 = vmatpush.bf16.msra.mxu0 0
    %1483 = vmatpush.bf16.msra.mxu0 0
    %1484 = vmatpush.bf16.msra.mxu0 0
    %1485 = vmatpush.bf16.msra.mxu0 0
    %1486 = vmatpush.bf16.msra.mxu0 0
    %1487 = vmatpush.bf16.msra.mxu0 %v1475
    %1488 = vmatpush.bf16.msra.mxu0 %v1474
    %1489 = vmatmul.bf16.gmra.mxu0 %v1479
    %v1490 = vpop.f32.mrf.mxu0
    %v1491 = vadd.f32 %v1464, %v1490
    %v1492 = vpop.f32.mrf.mxu0
    %v1493 = vadd.f32 %v1464, %v1492
    %1494 = vdwg.mxu0
    %v1495 = vmul.f32 %v1491, 1.702
    %v1496 = vmul.f32 %v1493, 1.702
    %v1497 = vxor.u32 %v1495, 2147483648
    %v1498 = vxor.u32 %v1496, 2147483648
    %v1499 = vmul.f32 %v1497, 1.442695
    %v1500 = vpow.pop %v1499
    %v1501 = vmul.f32 %v1498, 1.442695
    %v1502 = vpow.pop %v1501
    %v1503 = vadd.f32 %v1500, 1.0
    %v1504 = vadd.f32 %v1502, 1.0
    %v1505 = vrcp.pop %v1503
    %v1506 = vmul.f32 %v1503, %v1505
    %v1507 = vsub.f32 1.0, %v1506
    %v1508 = vmul.f32 %v1505, %v1507
    %v1509 = vadd.f32 %v1505, %v1508
    %vm1510 = vweird.f32 %v1503
    %vm1511 = vweird.f32 %v1505
    %vm1512 = vmor %vm1510, %vm1511
    %v1513 = vsel %vm1512, %v1505, %v1509
    %v1514 = vand.u32 2147483647, %v1503
    %vm1515 = vcmp.eq.f32.partialorder %v1514, 8.507059e+37
    %v1516 = vand.u32 %v1503, 2147483648
    %v1517 = vor.u32 1.1754944e-38, %v1516
    %v1518 = vsel %vm1515, %v1517, %v1513
    %v1519 = vmul.f32 1.0, %v1518
    %v1520 = vrcp.pop %v1504
    %v1521 = vmul.f32 %v1504, %v1520
    %v1522 = vsub.f32 1.0, %v1521
    %v1523 = vmul.f32 %v1520, %v1522
    %v1524 = vadd.f32 %v1520, %v1523
    %vm1525 = vweird.f32 %v1504
    %vm1526 = vweird.f32 %v1520
    %vm1527 = vmor %vm1525, %vm1526
    %v1528 = vsel %vm1527, %v1520, %v1524
    %v1529 = vand.u32 2147483647, %v1504
    %vm1530 = vcmp.eq.f32.partialorder %v1529, 8.507059e+37
    %v1531 = vand.u32 %v1504, 2147483648
    %v1532 = vor.u32 1.1754944e-38, %v1531
    %v1533 = vsel %vm1530, %v1532, %v1528
    %v1534 = vmul.f32 1.0, %v1533
    %v1535 = vmul.f32 %v1491, %v1519
    %v1536 = vmul.f32 %v1493, %v1534
    %v1537 = vpack.c.bf16 %v1536, %v1535
    %s1538 = scalar_lea.vmem %s10, 64
    %v1539 = vld [vmem:[%s1538] sm:$0xf]
    %v1540 = vld [vmem:[%s1538 + $0x4] sm:$0xf]
    %v1541 = vld [vmem:[%s1538 + $0x8] sm:$0xf]
    %v1542 = vld [vmem:[%s1538 + $0xc] sm:$0xf]
    %v1543 = vld [vmem:[%s1538 + $0x10] sm:$0xf]
    %v1544 = vld [vmem:[%s1538 + $0x14] sm:$0xf]
    %v1545 = vld [vmem:[%s1538 + $0x18] sm:$0xf]
    %v1546 = vld [vmem:[%s1538 + $0x1c] sm:$0xf]
    %v1547 = vld [vmem:[%s1538 + $0x20] sm:$0xf]
    %v1548 = vld [vmem:[%s1538 + $0x24] sm:$0xf]
    %v1549 = vld [vmem:[%s1538 + $0x28] sm:$0xf]
    %v1550 = vld [vmem:[%s1538 + $0x2c] sm:$0xf]
    %v1551 = vld [vmem:[%s1538 + $0x30] sm:$0xf]
    %v1552 = vld [vmem:[%s1538 + $0x34] sm:$0xf]
    %v1553 = vld [vmem:[%s1538 + $0x38] sm:$0xf]
    %v1554 = vld [vmem:[%s1538 + $0x3c] sm:$0xf]
    %v1571 = vunpack.c.l.b16 %v1539
    %v1572 = vunpack.c.l.b16 %v1540
    %v1573 = vunpack.c.l.b16 %v1541
    %v1574 = vunpack.c.l.b16 %v1542
    %v1575 = vunpack.c.l.b16 %v1543
    %v1576 = vunpack.c.l.b16 %v1544
    %v1577 = vunpack.c.l.b16 %v1545
    %v1578 = vunpack.c.l.b16 %v1546
    %v1579 = vunpack.c.l.b16 %v1547
    %v1580 = vunpack.c.l.b16 %v1548
    %v1581 = vunpack.c.l.b16 %v1549
    %v1582 = vunpack.c.l.b16 %v1550
    %v1583 = vunpack.c.l.b16 %v1551
    %v1584 = vunpack.c.l.b16 %v1552
    %v1585 = vunpack.c.l.b16 %v1553
    %v1586 = vunpack.c.l.b16 %v1554
    %v1587 = vpack.c.b16 %v1572, %v1571
    %v1588 = vpack.c.b16 %v1574, %v1573
    %v1589 = vpack.c.b16 %v1576, %v1575
    %v1590 = vpack.c.b16 %v1578, %v1577
    %v1591 = vpack.c.b16 %v1580, %v1579
    %v1592 = vpack.c.b16 %v1582, %v1581
    %v1593 = vpack.c.b16 %v1584, %v1583
    %v1594 = vpack.c.b16 %v1586, %v1585
    %1603 = vmatpush.bf16.msra.mxu0 %v1594
    %1604 = vmatpush.bf16.msra.mxu0 %v1593
    %1605 = vmatpush.bf16.msra.mxu0 %v1592
    %1606 = vmatpush.bf16.msra.mxu0 %v1591
    %1607 = vmatpush.bf16.msra.mxu0 %v1590
    %1608 = vmatpush.bf16.msra.mxu0 %v1589
    %1609 = vmatpush.bf16.msra.mxu0 %v1588
    %1610 = vmatpush.bf16.msra.mxu0 %v1587
    %1611 = vmatmul.bf16.gmra.mxu0 %v1537
    %v1612 = vpop.f32.mrf.mxu0
    %v1613 = vadd.f32 0.0, %v1612
    %v1614 = vpop.f32.mrf.mxu0
    %v1615 = vadd.f32 0.0, %v1614
    %1616 = vdwg.mxu0
    %v1617 = vadd.f32 %v1395, %v1613
    %v1618 = vadd.f32 %v1396, %v1615
    %s1619 = scalar_lea.vmem %s11, 1
    %v1620 = vld [vmem:[%s1619] sm:$0x1]
    %v1622 = vperm.slane %v1620, 0
    %v1624 = vadd.f32 %v1617, %v1622
    %v1625 = vadd.f32 %v1618, %v1622
    %v1626 = vld [vmem:[%s14] sm:$0x1]
    %v1627 = vld [vmem:[%s15] sm:$0x1]
    %v1628 = vsel %vm83, %v1624, 0.0
    %1629 = vadd.xlane.f32.xlu0 %v1628
    %v1630 = vpop.xlane.xlu0 %1629
    %v1631 = vsel %vm83, %v1625, 0.0
    %1632 = vadd.xlane.f32.xlu0 %v1631
    %v1633 = vpop.xlane.xlu0 %1632
    %v1634 = vmul.f32 %v1630, %v96
    %v1635 = vmul.f32 %v1633, %v96
    %v1636 = vsub.f32 %v1624, %v1634
    %v1637 = vsub.f32 %v1625, %v1635
    %v1638 = vmul.f32 %v1636, %v1636
    %v1639 = vmul.f32 %v1637, %v1637
    %v1640 = vsel %vm83, %v1638, 0.0
    %1641 = vadd.xlane.f32.xlu0 %v1640
    %v1642 = vpop.xlane.xlu0 %1641
    %v1643 = vsel %vm83, %v1639, 0.0
    %1644 = vadd.xlane.f32.xlu0 %v1643
    %v1645 = vpop.xlane.xlu0 %1644
    %v1646 = vmul.f32 %v1642, %v96
    %v1647 = vmul.f32 %v1645, %v96
    %v1648 = vadd.f32 %v1646, 1e-05
    %v1649 = vadd.f32 %v1647, 1e-05
    %v1650 = vrsqrt.pop %v1648
    %v1651 = vmul.f32 %v1650, %v1648
    %v1652 = vmul.f32 %v1651, %v1650
    %v1653 = vmul.f32 0.5, %v1652
    %v1654 = vsub.f32 1.5, %v1653
    %v1655 = vmul.f32 %v1650, %v1654
    %vm1656 = vweird.f32 %v1648
    %vm1657 = vweird.f32 %v1650
    %vm1658 = vmor %vm1656, %vm1657
    %v1659 = vsel %vm1658, %v1650, %v1655
    %v1660 = vrsqrt.pop %v1649
    %v1661 = vmul.f32 %v1660, %v1649
    %v1662 = vmul.f32 %v1661, %v1660
    %v1663 = vmul.f32 0.5, %v1662
    %v1664 = vsub.f32 1.5, %v1663
    %v1665 = vmul.f32 %v1660, %v1664
    %vm1666 = vweird.f32 %v1649
    %vm1667 = vweird.f32 %v1660
    %vm1668 = vmor %vm1666, %vm1667
    %v1669 = vsel %vm1668, %v1660, %v1665
    %v1670 = vmul.f32 %v1636, %v1659
    %v1671 = vmul.f32 %v1637, %v1669
    %v1673 = vperm.slane %v1626, 0
    %v1675 = vmul.f32 %v1670, %v1673
    %v1676 = vmul.f32 %v1671, %v1673
    %v1678 = vperm.slane %v1627, 0
    %v1680 = vadd.f32 %v1675, %v1678
    %v1681 = vadd.f32 %v1676, %v1678
    %v1682 = vsel %vm83, %v1680, 0.0
    %v1683 = vsel %vm83, %v1681, 0.0
    %1684 = vst [vmem:[%s17] sm:$0xff] %v1682
    %1685 = vst [vmem:[%s17 + $0x8] sm:$0xff] %v1683
    %v1686 = vld [vmem:[%s1] sm:$0x3]
    %v1688 = vsel %vm208, %v1686, 0
    %1690 = vmatpush.msra.mxu0 0.0
    %1691 = vmatpush.msra.mxu0 0.0
    %1692 = vmatpush.msra.mxu0 0.0
    %1693 = vmatpush.msra.mxu0 0.0
    %1694 = vmatpush.msra.mxu0 0.0
    %1695 = vmatpush.msra.mxu0 0.0
    %1696 = vmatpush.msra.mxu0 0.0
    %1697 = vmatpush.msra.mxu0 0.0
    %1698 = vmatpush.msra.mxu0 0.0
    %1699 = vmatpush.msra.mxu0 0.0
    %1700 = vmatpush.msra.mxu0 0.0
    %1701 = vmatpush.msra.mxu0 0.0
    %1702 = vmatpush.msra.mxu0 0.0
    %1703 = vmatpush.msra.mxu0 0.0
    %1704 = vmatpush.msra.mxu0 %v1681
    %1705 = vmatpush.msra.mxu0 %v1680
    %1706 = vmatmul.f32.gmra.mxu0 %v1688
    %v1707 = vpop.f32.mrf.mxu0
    %v1708 = vadd.f32 0.0, %v1707
    %1709 = vdwg.mxu0
    %v1710 = vld [vmem:[%s16] sm:$0xff]
    %v1711 = vld [vmem:[%s16 + $0x8] sm:$0xff]
    %v1712 = vld [vmem:[%s16 + $0x10] sm:$0xff]
    %v1713 = vld [vmem:[%s16 + $0x18] sm:$0xff]
    %v1715 = vsel %vm83, %v1708, 0
    %1717 = vmatpush.msra.mxu0 0.0
    %1718 = vmatpush.msra.mxu0 0.0
    %1719 = vmatpush.msra.mxu0 0.0
    %1720 = vmatpush.msra.mxu0 0.0
    %1721 = vmatpush.msra.mxu0 0.0
    %1722 = vmatpush.msra.mxu0 0.0
    %1723 = vmatpush.msra.mxu0 0.0
    %1724 = vmatpush.msra.mxu0 0.0
    %1725 = vmatpush.msra.mxu0 0.0
    %1726 = vmatpush.msra.mxu0 0.0
    %1727 = vmatpush.msra.mxu0 0.0
    %1728 = vmatpush.msra.mxu0 0.0
    %1729 = vmatpush.msra.mxu0 %v1713
    %1730 = vmatpush.msra.mxu0 %v1712
    %1731 = vmatpush.msra.mxu0 %v1711
    %1732 = vmatpush.msra.mxu0 %v1710
    %1733 = vmatmul.f32.gmra.mxu0 %v1715
    %v1734 = vpop.f32.mrf.mxu0
    %v1735 = vadd.f32 0.0, %v1734
    %1736 = vdwg.mxu0
    %1737 = vst [vmem:[#allocation2] sm:$0x3] %v1735
    // Predicated region
    $region70: #{clip_forward.1} parent=1 // pred_check
      _
    $region71: #{clip_forward.1} parent=1 // pred_check_branch
      %1739 = sbr.rel (0) target = $region73
    $region72: #{clip_forward.1} parent=1 // pred_region
      _
    $region73: #{clip_forward.1} parent=1 // pred_fallthru
      _
    // Predicated region
    $region74: #{clip_forward.1} parent=1 // pred_check
      _
    $region75: #{clip_forward.1} parent=1 // pred_check_branch
      %1741 = sbr.rel (0) target = $region77
    $region76: #{clip_forward.1} parent=1 // pred_region
      %1743 = vsyncadd [#allocation3], 0
      %s1745 = sshll.u32 [#allocation2], 4
      %s1746 = int_to_ptr.vmem [resolvable:$true] %s1745
      %s1747 = sshll.u32 %s18, 4
      %s1748 = int_to_ptr.hbm [resolvable:$true] %s1747
      %1750 = dma.vmem_to_hbm [thread:$0]  %s1746, 32, %s1748, [#allocation3]
    $region77: #{clip_forward.1} parent=1 // pred_fallthru
      _
    // Predicated region
    $region78: #{clip_forward.1} parent=1 // pred_check
      _
    $region79: #{clip_forward.1} parent=1 // pred_check_branch
      %1752 = sbr.rel (0) target = $region81
    $region80: #{clip_forward.1} parent=1 // pred_region
      _
    $region81: #{clip_forward.1} parent=1 // pred_fallthru
      _
    // Predicated region
    $region82: #{clip_forward.1} parent=1 // pred_check
      _
    $region83: #{clip_forward.1} parent=1 // pred_check_branch
      %1754 = sbr.rel (0) target = $region85
    $region84: #{clip_forward.1} parent=1 // pred_region
      %1756 = dma.done [#allocation3], 32
    $region85: #{clip_forward.1} parent=1 // pred_fallthru
      _
    %1757 = vsyncpa [#allocation3], 1

</llo_original>
